<compile_context>
chip_gen: v7x
topology: tpu7x:2x2x1
jax: 0.10.0
libtpu: 0.0.40
codegen_flags: <defaults>
</compile_context>

<pallas_src>
import functools

import numpy as np
import jax
import jax.numpy as jnp
from jax import lax
from jax.experimental import pallas as pl
from jax.experimental.pallas import tpu as pltpu

_EPS = 1e-8  # F.cosine_similarity default eps


@functools.lru_cache(maxsize=None)
def _interp_matrix(out_size: int, in_size: int) -> np.ndarray:
    """Row-stochastic bilinear interpolation matrix, align_corners=True (host constant)."""
    idx = np.arange(out_size, dtype=np.float32)
    if out_size > 1:
        src = idx * (float(in_size - 1) / float(out_size - 1))
    else:
        src = np.zeros((out_size,), np.float32)
    i0 = np.clip(np.floor(src), 0, in_size - 1).astype(np.int64)
    i1 = np.minimum(i0 + 1, in_size - 1)
    frac = (src - i0).astype(np.float32)
    w = np.zeros((out_size, in_size), np.float32)
    rows = np.arange(out_size)
    np.add.at(w, (rows, i0), 1.0 - frac)
    np.add.at(w, (rows, i1), frac)
    return w


def _make_fused_kernel(num_layers: int, mul_mode: bool):
    """Kernel processing one batch element: all layers fused, single output store."""

    def kernel(*refs):
        # refs = [en_0, de_0, wy_0, wxt_0, en_1, de_1, wy_1, wxt_1, ..., out]
        out_ref = refs[-1]
        acc = None
        for l in range(num_layers):
            en_ref, de_ref, wy_ref, wxt_ref = refs[4 * l: 4 * l + 4]
            en = en_ref[0].astype(jnp.float32)            # (C, h, w)
            de = de_ref[0].astype(jnp.float32)            # (C, h, w)

            # cosine similarity over the channel axis (VPU reduction over leading dim)
            dot = jnp.sum(en * de, axis=0)                # (h, w)
            en2 = jnp.sum(en * en, axis=0)                # (h, w)
            de2 = jnp.sum(de * de, axis=0)                # (h, w)
            # dot / max(sqrt(en2)*sqrt(de2), eps) == dot * rsqrt(max(en2*de2, eps^2))
            inv = lax.rsqrt(jnp.maximum(en2 * de2, _EPS * _EPS))   # EUP
            sim = 1.0 - dot * inv                         # (h, w)

            # bilinear upsample (align_corners=True) as two MXU matmuls
            # (Wx is pre-transposed on the host, no in-kernel transpose).
            tmp = jnp.dot(wy_ref[...], sim, preferred_element_type=jnp.float32)   # (OH, w)
            up = jnp.dot(tmp, wxt_ref[...], preferred_element_type=jnp.float32)   # (OH, OW)

            if acc is None:
                acc = up                                  # 0+up == up, 1*up == up
            else:
                acc = acc * up if mul_mode else acc + up

        out_ref[0] = acc                                  # single store per batch element

    return kernel


def _fused_anomaly_map(en_features, de_features, input_size, mul_mode):
    B = en_features[0].shape[0]
    OH, OW = input_size
    num_layers = len(en_features)

    inputs = []
    in_specs = []
    flops = 0
    transcendentals = 0
    bytes_accessed = 0
    vmem_est = 0

    for en, de in zip(en_features, de_features):
        _, C, h, w = en.shape
        wy = jnp.asarray(_interp_matrix(OH, h))           # (OH, h)
        wxt = jnp.asarray(_interp_matrix(OW, w).T)        # (w, OW) pre-transposed
        inputs += [en, de, wy, wxt]
        in_specs += [
            pl.BlockSpec((1, C, h, w), lambda b: (b, 0, 0, 0)),
            pl.BlockSpec((1, C, h, w), lambda b: (b, 0, 0, 0)),
            pl.BlockSpec((OH, h), lambda b: (0, 0)),
            pl.BlockSpec((w, OW), lambda b: (0, 0)),
        ]
        itemsize = np.dtype(en.dtype).itemsize
        flops += B * (5 * C * h * w + 2 * OH * h * w + 2 * OH * OW * w)
        transcendentals += B * h * w
        bytes_accessed += 2 * B * C * h * w * itemsize + (OH * h + w * OW) * 4
        # per-block VMEM: en + de double-buffered, plus the (resident) weights
        vmem_est += 2 * 2 * C * h * w * itemsize + (OH * h + w * OW) * 4
    bytes_accessed += B * OH * OW * 4
    vmem_est += 2 * OH * OW * 4 + (2 << 20)               # output double-buffer + headroom

    # Budget VMEM: default scoped limit as floor, clamp below v7x's 64 MiB physical.
    vmem_limit = int(min(max(vmem_est, 32 << 20), 60 << 20))

    kernel = _make_fused_kernel(num_layers, mul_mode)
    out = pl.pallas_call(
        kernel,
        out_shape=jax.ShapeDtypeStruct((B, OH, OW), jnp.float32),
        grid_spec=pltpu.PrefetchScalarGridSpec(
            num_scalar_prefetch=0,
            grid=(B,),
            in_specs=in_specs,
            out_specs=pl.BlockSpec((1, OH, OW), lambda b: (b, 0, 0)),
        ),
        compiler_params=pltpu.CompilerParams(
            dimension_semantics=("parallel",),
            vmem_limit_bytes=vmem_limit,
        ),
        cost_estimate=pl.CostEstimate(
            flops=flops,
            transcendentals=transcendentals,
            bytes_accessed=bytes_accessed,
        ),
    )(*inputs)
    return out.reshape(B, 1, OH, OW)


class AnomalyMapGenerator:
    """JAX/Pallas port of the PyTorch AnomalyMapGenerator (single fused kernel)."""

    def __init__(self, input_size, amap_mode="add"):
        self.input_size = input_size if isinstance(input_size, tuple) else tuple(input_size)
        self.amap_mode = amap_mode

    def __call__(self, en_features, de_features):
        return _fused_anomaly_map(
            list(en_features),
            list(de_features),
            self.input_size,
            mul_mode=(self.amap_mode == "mul"),
        )


def _reference(en_features, de_features, input_size, amap_mode="add"):
    """Plain-JAX reference (same align_corners=True bilinear formulation)."""
    B = en_features[0].shape[0]
    OH, OW = input_size
    if amap_mode == "mul":
        acc = jnp.ones((B, 1, OH, OW), jnp.float32)
    else:
        acc = jnp.zeros((B, 1, OH, OW), jnp.float32)
    for en, de in zip(en_features, de_features):
        en = en.astype(jnp.float32)
        de = de.astype(jnp.float32)
        dot = jnp.sum(en * de, axis=1)
        den = jnp.maximum(
            jnp.sqrt(jnp.sum(en * en, axis=1)) * jnp.sqrt(jnp.sum(de * de, axis=1)), _EPS
        )
        sim = 1.0 - dot / den                             # (B, h, w)
        wy = jnp.asarray(_interp_matrix(OH, en.shape[2]))
        wx = jnp.asarray(_interp_matrix(OW, en.shape[3]))
        up = jnp.einsum("Hh,bhw,Ww->bHW", wy, sim, wx)[:, None]   # (B,1,OH,OW)
        acc = acc * up if amap_mode == "mul" else acc + up
    return acc


if __name__ == "__main__":
    key = jax.random.PRNGKey(0)
    input_size = (16, 16)
    batch = 2
    # Typical feature-pyramid-like layers: (B, C, h, w)
    layer_shapes = [(batch, 4, 8, 8), (batch, 8, 4, 4), (batch, 16, 2, 2)]

    keys = jax.random.split(key, 2 * len(layer_shapes))
    en_features = [
        jax.random.normal(keys[2 * i], s, jnp.float32) for i, s in enumerate(layer_shapes)
    ]
    de_features = [
        jax.random.normal(keys[2 * i + 1], s, jnp.float32) for i, s in enumerate(layer_shapes)
    ]

    ok = True
    for mode in ("add", "mul"):
        gen = AnomalyMapGenerator(input_size, amap_mode=mode)
        out = jax.block_until_ready(gen(en_features, de_features))
        ref = _reference(en_features, de_features, input_size, mode)
        assert out.shape == (batch, 1, input_size[0], input_size[1])
        ok &= bool(jnp.allclose(out, ref, atol=1e-4, rtol=1e-4))

    assert ok
    print("KERNEL_OK")
</pallas_src>

<mosaic_0001>
module attributes {stable_mosaic.version = 11 : i64} {
  func.func @kernel(%arg0: i32, %arg1: memref<1x4x8x8xf32, #tpu.memory_space<vmem>>, %arg2: memref<1x4x8x8xf32, #tpu.memory_space<vmem>>, %arg3: memref<16x8xf32, #tpu.memory_space<vmem>>, %arg4: memref<8x16xf32, #tpu.memory_space<vmem>>, %arg5: memref<1x8x4x4xf32, #tpu.memory_space<vmem>>, %arg6: memref<1x8x4x4xf32, #tpu.memory_space<vmem>>, %arg7: memref<16x4xf32, #tpu.memory_space<vmem>>, %arg8: memref<4x16xf32, #tpu.memory_space<vmem>>, %arg9: memref<1x16x2x2xf32, #tpu.memory_space<vmem>>, %arg10: memref<1x16x2x2xf32, #tpu.memory_space<vmem>>, %arg11: memref<16x2xf32, #tpu.memory_space<vmem>>, %arg12: memref<2x16xf32, #tpu.memory_space<vmem>>, %arg13: memref<1x16x16xf32, #tpu.memory_space<vmem>>) attributes {dimension_semantics = [#tpu.dimension_semantics<parallel>], iteration_bounds = array<i64: 2>, scalar_prefetch = 0 : i64, scratch_operands = 0 : i64, tpu.core_type = #tpu.core_type<tc>, window_params = [{transform_indices = @transform_0, window_bounds = array<i64: 1, 4, 8, 8>}, {transform_indices = @transform_1, window_bounds = array<i64: 1, 4, 8, 8>}, {pipeline_mode = #tpu.pipeline_mode<synchronous>, transform_indices = @transform_2, window_bounds = array<i64: 16, 8>}, {pipeline_mode = #tpu.pipeline_mode<synchronous>, transform_indices = @transform_3, window_bounds = array<i64: 8, 16>}, {transform_indices = @transform_4, window_bounds = array<i64: 1, 8, 4, 4>}, {transform_indices = @transform_5, window_bounds = array<i64: 1, 8, 4, 4>}, {pipeline_mode = #tpu.pipeline_mode<synchronous>, transform_indices = @transform_6, window_bounds = array<i64: 16, 4>}, {pipeline_mode = #tpu.pipeline_mode<synchronous>, transform_indices = @transform_7, window_bounds = array<i64: 4, 16>}, {transform_indices = @transform_8, window_bounds = array<i64: 1, 16, 2, 2>}, {transform_indices = @transform_9, window_bounds = array<i64: 1, 16, 2, 2>}, {pipeline_mode = #tpu.pipeline_mode<synchronous>, transform_indices = @transform_10, window_bounds = array<i64: 16, 2>}, {pipeline_mode = #tpu.pipeline_mode<synchronous>, transform_indices = @transform_11, window_bounds = array<i64: 2, 16>}, {transform_indices = @transform_12, window_bounds = array<i64: 1, 16, 16>}]} {
    %c0 = arith.constant 0 : index
    %c0_0 = arith.constant 0 : index
    %c0_1 = arith.constant 0 : index
    %c0_2 = arith.constant 0 : index
    %0 = vector.load %arg1[%c0, %c0_0, %c0_1, %c0_2] : memref<1x4x8x8xf32, #tpu.memory_space<vmem>>, vector<1x4x8x8xf32>
    %1 = vector.shape_cast %0 : vector<1x4x8x8xf32> to vector<4x8x8xf32>
    %c0_3 = arith.constant 0 : index
    %c0_4 = arith.constant 0 : index
    %c0_5 = arith.constant 0 : index
    %c0_6 = arith.constant 0 : index
    %2 = vector.load %arg2[%c0_3, %c0_4, %c0_5, %c0_6] : memref<1x4x8x8xf32, #tpu.memory_space<vmem>>, vector<1x4x8x8xf32>
    %3 = vector.shape_cast %2 : vector<1x4x8x8xf32> to vector<4x8x8xf32>
    %4 = arith.mulf %1, %3 : vector<4x8x8xf32>
    %cst = arith.constant dense<0.000000e+00> : vector<8x8xf32>
    %5 = vector.multi_reduction <add>, %4, %cst [0] : vector<4x8x8xf32> to vector<8x8xf32>
    %6 = arith.mulf %1, %1 : vector<4x8x8xf32>
    %cst_7 = arith.constant dense<0.000000e+00> : vector<8x8xf32>
    %7 = vector.multi_reduction <add>, %6, %cst_7 [0] : vector<4x8x8xf32> to vector<8x8xf32>
    %8 = arith.mulf %3, %3 : vector<4x8x8xf32>
    %cst_8 = arith.constant dense<0.000000e+00> : vector<8x8xf32>
    %9 = vector.multi_reduction <add>, %8, %cst_8 [0] : vector<4x8x8xf32> to vector<8x8xf32>
    %10 = arith.mulf %7, %9 : vector<8x8xf32>
    %cst_9 = arith.constant 1.000000e-16 : f32
    %11 = vector.broadcast %cst_9 : f32 to vector<8x8xf32>
    %12 = arith.maximumf %10, %11 : vector<8x8xf32>
    %13 = math.rsqrt %12 : vector<8x8xf32>
    %14 = arith.mulf %5, %13 : vector<8x8xf32>
    %cst_10 = arith.constant 1.000000e+00 : f32
    %15 = vector.broadcast %cst_10 : f32 to vector<8x8xf32>
    %16 = arith.subf %15, %14 : vector<8x8xf32>
    %c0_11 = arith.constant 0 : index
    %c0_12 = arith.constant 0 : index
    %17 = vector.load %arg3[%c0_11, %c0_12] : memref<16x8xf32, #tpu.memory_space<vmem>>, vector<16x8xf32>
    %cst_13 = arith.constant dense<0.000000e+00> : vector<16x8xf32>
    %18 = tpu.matmul %17, %16, %cst_13 {dimension_numbers = #tpu.dot_dimension_numbers<[1], [0], [0], [1], [0, 0, 1, 1], [], []>} : vector<16x8xf32>, vector<8x8xf32>, vector<16x8xf32> -> vector<16x8xf32>
    %c0_14 = arith.constant 0 : index
    %c0_15 = arith.constant 0 : index
    %19 = vector.load %arg4[%c0_14, %c0_15] : memref<8x16xf32, #tpu.memory_space<vmem>>, vector<8x16xf32>
    %cst_16 = arith.constant dense<0.000000e+00> : vector<16x16xf32>
    %20 = tpu.matmul %18, %19, %cst_16 {dimension_numbers = #tpu.dot_dimension_numbers<[1], [0], [0], [1], [0, 0, 1, 1], [], []>} : vector<16x8xf32>, vector<8x16xf32>, vector<16x16xf32> -> vector<16x16xf32>
    %c0_17 = arith.constant 0 : index
    %c0_18 = arith.constant 0 : index
    %c0_19 = arith.constant 0 : index
    %c0_20 = arith.constant 0 : index
    %21 = vector.load %arg5[%c0_17, %c0_18, %c0_19, %c0_20] : memref<1x8x4x4xf32, #tpu.memory_space<vmem>>, vector<1x8x4x4xf32>
    %22 = vector.shape_cast %21 : vector<1x8x4x4xf32> to vector<8x4x4xf32>
    %c0_21 = arith.constant 0 : index
    %c0_22 = arith.constant 0 : index
    %c0_23 = arith.constant 0 : index
    %c0_24 = arith.constant 0 : index
    %23 = vector.load %arg6[%c0_21, %c0_22, %c0_23, %c0_24] : memref<1x8x4x4xf32, #tpu.memory_space<vmem>>, vector<1x8x4x4xf32>
    %24 = vector.shape_cast %23 : vector<1x8x4x4xf32> to vector<8x4x4xf32>
    %25 = arith.mulf %22, %24 : vector<8x4x4xf32>
    %cst_25 = arith.constant dense<0.000000e+00> : vector<4x4xf32>
    %26 = vector.multi_reduction <add>, %25, %cst_25 [0] : vector<8x4x4xf32> to vector<4x4xf32>
    %27 = arith.mulf %22, %22 : vector<8x4x4xf32>
    %cst_26 = arith.constant dense<0.000000e+00> : vector<4x4xf32>
    %28 = vector.multi_reduction <add>, %27, %cst_26 [0] : vector<8x4x4xf32> to vector<4x4xf32>
    %29 = arith.mulf %24, %24 : vector<8x4x4xf32>
    %cst_27 = arith.constant dense<0.000000e+00> : vector<4x4xf32>
    %30 = vector.multi_reduction <add>, %29, %cst_27 [0] : vector<8x4x4xf32> to vector<4x4xf32>
    %31 = arith.mulf %28, %30 : vector<4x4xf32>
    %cst_28 = arith.constant 1.000000e-16 : f32
    %32 = vector.broadcast %cst_28 : f32 to vector<4x4xf32>
    %33 = arith.maximumf %31, %32 : vector<4x4xf32>
    %34 = math.rsqrt %33 : vector<4x4xf32>
    %35 = arith.mulf %26, %34 : vector<4x4xf32>
    %cst_29 = arith.constant 1.000000e+00 : f32
    %36 = vector.broadcast %cst_29 : f32 to vector<4x4xf32>
    %37 = arith.subf %36, %35 : vector<4x4xf32>
    %c0_30 = arith.constant 0 : index
    %c0_31 = arith.constant 0 : index
    %38 = vector.load %arg7[%c0_30, %c0_31] : memref<16x4xf32, #tpu.memory_space<vmem>>, vector<16x4xf32>
    %cst_32 = arith.constant dense<0.000000e+00> : vector<16x4xf32>
    %39 = tpu.matmul %38, %37, %cst_32 {dimension_numbers = #tpu.dot_dimension_numbers<[1], [0], [0], [1], [0, 0, 1, 1], [], []>} : vector<16x4xf32>, vector<4x4xf32>, vector<16x4xf32> -> vector<16x4xf32>
    %c0_33 = arith.constant 0 : index
    %c0_34 = arith.constant 0 : index
    %40 = vector.load %arg8[%c0_33, %c0_34] : memref<4x16xf32, #tpu.memory_space<vmem>>, vector<4x16xf32>
    %cst_35 = arith.constant dense<0.000000e+00> : vector<16x16xf32>
    %41 = tpu.matmul %39, %40, %cst_35 {dimension_numbers = #tpu.dot_dimension_numbers<[1], [0], [0], [1], [0, 0, 1, 1], [], []>} : vector<16x4xf32>, vector<4x16xf32>, vector<16x16xf32> -> vector<16x16xf32>
    %42 = arith.addf %20, %41 : vector<16x16xf32>
    %c0_36 = arith.constant 0 : index
    %c0_37 = arith.constant 0 : index
    %c0_38 = arith.constant 0 : index
    %c0_39 = arith.constant 0 : index
    %43 = vector.load %arg9[%c0_36, %c0_37, %c0_38, %c0_39] : memref<1x16x2x2xf32, #tpu.memory_space<vmem>>, vector<1x16x2x2xf32>
    %44 = vector.shape_cast %43 : vector<1x16x2x2xf32> to vector<16x2x2xf32>
    %c0_40 = arith.constant 0 : index
    %c0_41 = arith.constant 0 : index
    %c0_42 = arith.constant 0 : index
    %c0_43 = arith.constant 0 : index
    %45 = vector.load %arg10[%c0_40, %c0_41, %c0_42, %c0_43] : memref<1x16x2x2xf32, #tpu.memory_space<vmem>>, vector<1x16x2x2xf32>
    %46 = vector.shape_cast %45 : vector<1x16x2x2xf32> to vector<16x2x2xf32>
    %47 = arith.mulf %44, %46 : vector<16x2x2xf32>
    %cst_44 = arith.constant dense<0.000000e+00> : vector<2x2xf32>
    %48 = vector.multi_reduction <add>, %47, %cst_44 [0] : vector<16x2x2xf32> to vector<2x2xf32>
    %49 = arith.mulf %44, %44 : vector<16x2x2xf32>
    %cst_45 = arith.constant dense<0.000000e+00> : vector<2x2xf32>
    %50 = vector.multi_reduction <add>, %49, %cst_45 [0] : vector<16x2x2xf32> to vector<2x2xf32>
    %51 = arith.mulf %46, %46 : vector<16x2x2xf32>
    %cst_46 = arith.constant dense<0.000000e+00> : vector<2x2xf32>
    %52 = vector.multi_reduction <add>, %51, %cst_46 [0] : vector<16x2x2xf32> to vector<2x2xf32>
    %53 = arith.mulf %50, %52 : vector<2x2xf32>
    %cst_47 = arith.constant 1.000000e-16 : f32
    %54 = vector.broadcast %cst_47 : f32 to vector<2x2xf32>
    %55 = arith.maximumf %53, %54 : vector<2x2xf32>
    %56 = math.rsqrt %55 : vector<2x2xf32>
    %57 = arith.mulf %48, %56 : vector<2x2xf32>
    %cst_48 = arith.constant 1.000000e+00 : f32
    %58 = vector.broadcast %cst_48 : f32 to vector<2x2xf32>
    %59 = arith.subf %58, %57 : vector<2x2xf32>
    %c0_49 = arith.constant 0 : index
    %c0_50 = arith.constant 0 : index
    %60 = vector.load %arg11[%c0_49, %c0_50] : memref<16x2xf32, #tpu.memory_space<vmem>>, vector<16x2xf32>
    %cst_51 = arith.constant dense<0.000000e+00> : vector<16x2xf32>
    %61 = tpu.matmul %60, %59, %cst_51 {dimension_numbers = #tpu.dot_dimension_numbers<[1], [0], [0], [1], [0, 0, 1, 1], [], []>} : vector<16x2xf32>, vector<2x2xf32>, vector<16x2xf32> -> vector<16x2xf32>
    %c0_52 = arith.constant 0 : index
    %c0_53 = arith.constant 0 : index
    %62 = vector.load %arg12[%c0_52, %c0_53] : memref<2x16xf32, #tpu.memory_space<vmem>>, vector<2x16xf32>
    %cst_54 = arith.constant dense<0.000000e+00> : vector<16x16xf32>
    %63 = tpu.matmul %61, %62, %cst_54 {dimension_numbers = #tpu.dot_dimension_numbers<[1], [0], [0], [1], [0, 0, 1, 1], [], []>} : vector<16x2xf32>, vector<2x16xf32>, vector<16x16xf32> -> vector<16x16xf32>
    %64 = arith.addf %42, %63 : vector<16x16xf32>
    %c0_55 = arith.constant 0 : index
    %c0_56 = arith.constant 0 : index
    %c0_57 = arith.constant 0 : index
    %65 = vector.load %arg13[%c0_55, %c0_56, %c0_57] : memref<1x16x16xf32, #tpu.memory_space<vmem>>, vector<1x16x16xf32>
    %66 = vector.shape_cast %65 : vector<1x16x16xf32> to vector<16x16xf32>
    %67 = vector.shape_cast %64 : vector<16x16xf32> to vector<1x16x16xf32>
    tpu.vector_store %arg13[%c0_55, %c0_56, %c0_57], %67 {strides = array<i32>} : memref<1x16x16xf32, #tpu.memory_space<vmem>>, vector<1x16x16xf32>,
    return
  }
  func.func @transform_0(%arg0: i32) -> (i32, i32, i32, i32) {
    %c0_i32 = arith.constant 0 : i32
    %c0_i32_0 = arith.constant 0 : i32
    %c0_i32_1 = arith.constant 0 : i32
    %c0_i32_2 = arith.constant 0 : i32
    return %arg0, %c0_i32, %c0_i32_0, %c0_i32_1 : i32, i32, i32, i32
  }
  func.func @transform_1(%arg0: i32) -> (i32, i32, i32, i32) {
    %c0_i32 = arith.constant 0 : i32
    %c0_i32_0 = arith.constant 0 : i32
    %c0_i32_1 = arith.constant 0 : i32
    %c0_i32_2 = arith.constant 0 : i32
    return %arg0, %c0_i32, %c0_i32_0, %c0_i32_1 : i32, i32, i32, i32
  }
  func.func @transform_2(%arg0: i32) -> (i32, i32) {
    %c0_i32 = arith.constant 0 : i32
    %c0_i32_0 = arith.constant 0 : i32
    %c0_i32_1 = arith.constant 0 : i32
    return %c0_i32, %c0_i32_0 : i32, i32
  }
  func.func @transform_3(%arg0: i32) -> (i32, i32) {
    %c0_i32 = arith.constant 0 : i32
    %c0_i32_0 = arith.constant 0 : i32
    %c0_i32_1 = arith.constant 0 : i32
    return %c0_i32, %c0_i32_0 : i32, i32
  }
  func.func @transform_4(%arg0: i32) -> (i32, i32, i32, i32) {
    %c0_i32 = arith.constant 0 : i32
    %c0_i32_0 = arith.constant 0 : i32
    %c0_i32_1 = arith.constant 0 : i32
    %c0_i32_2 = arith.constant 0 : i32
    return %arg0, %c0_i32, %c0_i32_0, %c0_i32_1 : i32, i32, i32, i32
  }
  func.func @transform_5(%arg0: i32) -> (i32, i32, i32, i32) {
    %c0_i32 = arith.constant 0 : i32
    %c0_i32_0 = arith.constant 0 : i32
    %c0_i32_1 = arith.constant 0 : i32
    %c0_i32_2 = arith.constant 0 : i32
    return %arg0, %c0_i32, %c0_i32_0, %c0_i32_1 : i32, i32, i32, i32
  }
  func.func @transform_6(%arg0: i32) -> (i32, i32) {
    %c0_i32 = arith.constant 0 : i32
    %c0_i32_0 = arith.constant 0 : i32
    %c0_i32_1 = arith.constant 0 : i32
    return %c0_i32, %c0_i32_0 : i32, i32
  }
  func.func @transform_7(%arg0: i32) -> (i32, i32) {
    %c0_i32 = arith.constant 0 : i32
    %c0_i32_0 = arith.constant 0 : i32
    %c0_i32_1 = arith.constant 0 : i32
    return %c0_i32, %c0_i32_0 : i32, i32
  }
  func.func @transform_8(%arg0: i32) -> (i32, i32, i32, i32) {
    %c0_i32 = arith.constant 0 : i32
    %c0_i32_0 = arith.constant 0 : i32
    %c0_i32_1 = arith.constant 0 : i32
    %c0_i32_2 = arith.constant 0 : i32
    return %arg0, %c0_i32, %c0_i32_0, %c0_i32_1 : i32, i32, i32, i32
  }
  func.func @transform_9(%arg0: i32) -> (i32, i32, i32, i32) {
    %c0_i32 = arith.constant 0 : i32
    %c0_i32_0 = arith.constant 0 : i32
    %c0_i32_1 = arith.constant 0 : i32
    %c0_i32_2 = arith.constant 0 : i32
    return %arg0, %c0_i32, %c0_i32_0, %c0_i32_1 : i32, i32, i32, i32
  }
  func.func @transform_10(%arg0: i32) -> (i32, i32) {
    %c0_i32 = arith.constant 0 : i32
    %c0_i32_0 = arith.constant 0 : i32
    %c0_i32_1 = arith.constant 0 : i32
    return %c0_i32, %c0_i32_0 : i32, i32
  }
  func.func @transform_11(%arg0: i32) -> (i32, i32) {
    %c0_i32 = arith.constant 0 : i32
    %c0_i32_0 = arith.constant 0 : i32
    %c0_i32_1 = arith.constant 0 : i32
    return %c0_i32, %c0_i32_0 : i32, i32
  }
  func.func @transform_12(%arg0: i32) -> (i32, i32, i32) {
    %c0_i32 = arith.constant 0 : i32
    %c0_i32_0 = arith.constant 0 : i32
    %c0_i32_1 = arith.constant 0 : i32
    return %arg0, %c0_i32, %c0_i32_0 : i32, i32, i32
  }
}

</mosaic_0001>

<llo_original>
// kernel: tpu_custom_call.1
$region0: #{tpu_custom_call.1}
  #allocation0 [shape = 'u32[]', space=smem, size = 0x4, offset = 0x4, fixed_abs, tag = 'smem constant byte address 0x4 - core index']
  #allocation1 [shape = 'u32[144,128]{1,0:T(1,128)}', space=vmem, size = 0x12000, scoped, tag = 'internal scratch']
  %s0 = inlined_call_operand.vmem [shape: f32[2,4,8,8], index: 0, kind: input, shape index: {}]
  %s1 = inlined_call_operand.vmem [shape: f32[2,4,8,8], index: 1, kind: input, shape index: {}]
  %s2 = inlined_call_operand.vmem [shape: f32[16,8], index: 2, kind: input, shape index: {}]
  %s3 = inlined_call_operand.vmem [shape: f32[8,16], index: 3, kind: input, shape index: {}]
  %s4 = inlined_call_operand.vmem [shape: f32[2,8,4,4], index: 4, kind: input, shape index: {}]
  %s5 = inlined_call_operand.vmem [shape: f32[2,8,4,4], index: 5, kind: input, shape index: {}]
  %s6 = inlined_call_operand.vmem [shape: f32[16,4], index: 6, kind: input, shape index: {}]
  %s7 = inlined_call_operand.vmem [shape: f32[4,16], index: 7, kind: input, shape index: {}]
  %s8 = inlined_call_operand.vmem [shape: f32[2,16,2,2], index: 8, kind: input, shape index: {}]
  %s9 = inlined_call_operand.vmem [shape: f32[2,16,2,2], index: 9, kind: input, shape index: {}]
  %s10 = inlined_call_operand.vmem [shape: f32[16,2], index: 10, kind: input, shape index: {}]
  %s11 = inlined_call_operand.vmem [shape: f32[2,16], index: 11, kind: input, shape index: {}]
  %s12 = inlined_call_operand.hbm [shape: f32[2,16,16], index: 12, kind: output, shape index: {}]
  %s13 = sld [smem:[#allocation0]]
  $region81: #{tpu_custom_call.1} parent=0
    _
  %s15 = ssub.s32 1, %s13
  %s16 = scalar_select 0, %s15, %s13
  $region1: #{tpu_custom_call.1} parent=0
    #allocation2 [shape = 'u8[16384]{0}', space=vmem, size = 0x4000, scoped, tag = 'output window, operand 0']
    #allocation3 [shape = 's32[2]{0}', space=sflag, size = 0x8, scoped, tag = 'scoped memory for tpu_custom_call.1']
    %17 = vsyncpa [#allocation3], 0
    %s18 = scalar_lea.sflag [#allocation3], 1
    %19 = vsyncpa %s18, 0
    loop: start=0, step=1, limit=4
    $region2: #{tpu_custom_call.1} parent=1 // loop_pre_header
      _
    $region3: #{tpu_custom_call.1} parent=1 // loop_header
      %s21 = sphi 0, %s25
      %p22 = scmp.ge.s32.totalorder %s21, 4
      %s31 = sphi 0, %s33
      %s34 = sphi 0, %s31
      %s35 = sphi 0, %s34
      %s51 = sphi 0, %s35
      %s57 = sphi 0, %s59
      %s60 = sphi 0, %s57
      %s61 = sphi 0, %s60
      %s77 = sphi 0, %s61
      %s81 = sphi 0, %s81
      %s83 = sphi 0, %s81
      %s84 = sphi 0, %s83
      %s98 = sphi 0, %s84
      %s102 = sphi 0, %s102
      %s104 = sphi 0, %s102
      %s105 = sphi 0, %s104
      %s119 = sphi 0, %s105
      %s125 = sphi 0, %s127
      %s128 = sphi 0, %s125
      %s129 = sphi 0, %s128
      %s145 = sphi 0, %s129
      %s151 = sphi 0, %s153
      %s154 = sphi 0, %s151
      %s155 = sphi 0, %s154
      %s171 = sphi 0, %s155
      %s175 = sphi 0, %s175
      %s177 = sphi 0, %s175
      %s178 = sphi 0, %s177
      %s192 = sphi 0, %s178
      %s196 = sphi 0, %s196
      %s198 = sphi 0, %s196
      %s199 = sphi 0, %s198
      %s213 = sphi 0, %s199
      %s219 = sphi 0, %s221
      %s222 = sphi 0, %s219
      %s223 = sphi 0, %s222
      %s239 = sphi 0, %s223
      %s245 = sphi 0, %s247
      %s248 = sphi 0, %s245
      %s249 = sphi 0, %s248
      %s265 = sphi 0, %s249
      %s269 = sphi 0, %s269
      %s271 = sphi 0, %s269
      %s272 = sphi 0, %s271
      %s286 = sphi 0, %s272
      %s290 = sphi 0, %s290
      %s292 = sphi 0, %s290
      %s293 = sphi 0, %s292
      %s307 = sphi 0, %s293
      %s313 = sphi 0, %s315
      %s316 = sphi 0, %s313
      %s317 = sphi 0, %s316
      %s333 = sphi 0, %s317
    $region4: #{tpu_custom_call.1} parent=1 // loop_header_branch
      %24 = sbr.rel (%p22) target = $region8
    $region5: #{tpu_custom_call.1} parent=1 // loop_body
      %s26 = ssub.s32 %s21, 1
      %s27 = ssub.s32 %s21, 2
      %s28 = sadd.s32 %s21, 1
      %s29 = ssub.s32 %s21, %s28
      %p30 = scmp.eq.s32.totalorder %s29, 0
      %s32 = sadd.s32 %s31, 1
      %s33 = scalar_select %p30, %s31, %s32
      %p36 = pneg %p30
      %p37 = scmp.eq.s32.totalorder %s21, 1
      %p38 = por %p36, %p37
      %p39 = scmp.ne.s32.totalorder %s31, %s34
      %p40 = scmp.eq.s32.totalorder %s21, 0
      %p41 = por %p39, %p40
      %p42 = scmp.ne.s32.totalorder %s31, %s34
      %p43 = scmp.eq.s32.totalorder %s26, 1
      %p44 = por %p42, %p43
      %p45 = scmp.ne.s32.totalorder %s34, %s35
      %p46 = scmp.eq.s32.totalorder %s26, 0
      %p47 = por %p45, %p46
      %p48 = scmp.ne.s32.totalorder %s34, %s35
      %p49 = scmp.eq.s32.totalorder %s27, 1
      %p50 = por %p48, %p49
      %p52 = scmp.ne.s32.totalorder %s35, %s51
      %p53 = scmp.eq.s32.totalorder %s27, 0
      %p54 = por %p52, %p53
      %s55 = ssub.s32 %s21, %s28
      %p56 = scmp.eq.s32.totalorder %s55, 0
      %s58 = sadd.s32 %s57, 1
      %s59 = scalar_select %p56, %s57, %s58
      %p62 = pneg %p56
      %p63 = scmp.eq.s32.totalorder %s21, 1
      %p64 = por %p62, %p63
      %p65 = scmp.ne.s32.totalorder %s57, %s60
      %p66 = scmp.eq.s32.totalorder %s21, 0
      %p67 = por %p65, %p66
      %p68 = scmp.ne.s32.totalorder %s57, %s60
      %p69 = scmp.eq.s32.totalorder %s26, 1
      %p70 = por %p68, %p69
      %p71 = scmp.ne.s32.totalorder %s60, %s61
      %p72 = scmp.eq.s32.totalorder %s26, 0
      %p73 = por %p71, %p72
      %p74 = scmp.ne.s32.totalorder %s60, %s61
      %p75 = scmp.eq.s32.totalorder %s27, 1
      %p76 = por %p74, %p75
      %p78 = scmp.ne.s32.totalorder %s61, %s77
      %p79 = scmp.eq.s32.totalorder %s27, 0
      %p80 = por %p78, %p79
      %s82 = sadd.s32 %s81, 1
      %p85 = scmp.eq.s32.totalorder %s21, 1
      %p86 = scmp.ne.s32.totalorder %s81, %s83
      %p87 = scmp.eq.s32.totalorder %s21, 0
      %p88 = por %p86, %p87
      %p89 = scmp.ne.s32.totalorder %s81, %s83
      %p90 = scmp.eq.s32.totalorder %s26, 1
      %p91 = por %p89, %p90
      %p92 = scmp.ne.s32.totalorder %s83, %s84
      %p93 = scmp.eq.s32.totalorder %s26, 0
      %p94 = por %p92, %p93
      %p95 = scmp.ne.s32.totalorder %s83, %s84
      %p96 = scmp.eq.s32.totalorder %s27, 1
      %p97 = por %p95, %p96
      %p99 = scmp.ne.s32.totalorder %s84, %s98
      %p100 = scmp.eq.s32.totalorder %s27, 0
      %p101 = por %p99, %p100
      %s103 = sadd.s32 %s102, 1
      %p106 = scmp.eq.s32.totalorder %s21, 1
      %p107 = scmp.ne.s32.totalorder %s102, %s104
      %p108 = scmp.eq.s32.totalorder %s21, 0
      %p109 = por %p107, %p108
      %p110 = scmp.ne.s32.totalorder %s102, %s104
      %p111 = scmp.eq.s32.totalorder %s26, 1
      %p112 = por %p110, %p111
      %p113 = scmp.ne.s32.totalorder %s104, %s105
      %p114 = scmp.eq.s32.totalorder %s26, 0
      %p115 = por %p113, %p114
      %p116 = scmp.ne.s32.totalorder %s104, %s105
      %p117 = scmp.eq.s32.totalorder %s27, 1
      %p118 = por %p116, %p117
      %p120 = scmp.ne.s32.totalorder %s105, %s119
      %p121 = scmp.eq.s32.totalorder %s27, 0
      %p122 = por %p120, %p121
      %s123 = ssub.s32 %s21, %s28
      %p124 = scmp.eq.s32.totalorder %s123, 0
      %s126 = sadd.s32 %s125, 1
      %s127 = scalar_select %p124, %s125, %s126
      %p130 = pneg %p124
      %p131 = scmp.eq.s32.totalorder %s21, 1
      %p132 = por %p130, %p131
      %p133 = scmp.ne.s32.totalorder %s125, %s128
      %p134 = scmp.eq.s32.totalorder %s21, 0
      %p135 = por %p133, %p134
      %p136 = scmp.ne.s32.totalorder %s125, %s128
      %p137 = scmp.eq.s32.totalorder %s26, 1
      %p138 = por %p136, %p137
      %p139 = scmp.ne.s32.totalorder %s128, %s129
      %p140 = scmp.eq.s32.totalorder %s26, 0
      %p141 = por %p139, %p140
      %p142 = scmp.ne.s32.totalorder %s128, %s129
      %p143 = scmp.eq.s32.totalorder %s27, 1
      %p144 = por %p142, %p143
      %p146 = scmp.ne.s32.totalorder %s129, %s145
      %p147 = scmp.eq.s32.totalorder %s27, 0
      %p148 = por %p146, %p147
      %s149 = ssub.s32 %s21, %s28
      %p150 = scmp.eq.s32.totalorder %s149, 0
      %s152 = sadd.s32 %s151, 1
      %s153 = scalar_select %p150, %s151, %s152
      %p156 = pneg %p150
      %p157 = scmp.eq.s32.totalorder %s21, 1
      %p158 = por %p156, %p157
      %p159 = scmp.ne.s32.totalorder %s151, %s154
      %p160 = scmp.eq.s32.totalorder %s21, 0
      %p161 = por %p159, %p160
      %p162 = scmp.ne.s32.totalorder %s151, %s154
      %p163 = scmp.eq.s32.totalorder %s26, 1
      %p164 = por %p162, %p163
      %p165 = scmp.ne.s32.totalorder %s154, %s155
      %p166 = scmp.eq.s32.totalorder %s26, 0
      %p167 = por %p165, %p166
      %p168 = scmp.ne.s32.totalorder %s154, %s155
      %p169 = scmp.eq.s32.totalorder %s27, 1
      %p170 = por %p168, %p169
      %p172 = scmp.ne.s32.totalorder %s155, %s171
      %p173 = scmp.eq.s32.totalorder %s27, 0
      %p174 = por %p172, %p173
      %s176 = sadd.s32 %s175, 1
      %p179 = scmp.eq.s32.totalorder %s21, 1
      %p180 = scmp.ne.s32.totalorder %s175, %s177
      %p181 = scmp.eq.s32.totalorder %s21, 0
      %p182 = por %p180, %p181
      %p183 = scmp.ne.s32.totalorder %s175, %s177
      %p184 = scmp.eq.s32.totalorder %s26, 1
      %p185 = por %p183, %p184
      %p186 = scmp.ne.s32.totalorder %s177, %s178
      %p187 = scmp.eq.s32.totalorder %s26, 0
      %p188 = por %p186, %p187
      %p189 = scmp.ne.s32.totalorder %s177, %s178
      %p190 = scmp.eq.s32.totalorder %s27, 1
      %p191 = por %p189, %p190
      %p193 = scmp.ne.s32.totalorder %s178, %s192
      %p194 = scmp.eq.s32.totalorder %s27, 0
      %p195 = por %p193, %p194
      %s197 = sadd.s32 %s196, 1
      %p200 = scmp.eq.s32.totalorder %s21, 1
      %p201 = scmp.ne.s32.totalorder %s196, %s198
      %p202 = scmp.eq.s32.totalorder %s21, 0
      %p203 = por %p201, %p202
      %p204 = scmp.ne.s32.totalorder %s196, %s198
      %p205 = scmp.eq.s32.totalorder %s26, 1
      %p206 = por %p204, %p205
      %p207 = scmp.ne.s32.totalorder %s198, %s199
      %p208 = scmp.eq.s32.totalorder %s26, 0
      %p209 = por %p207, %p208
      %p210 = scmp.ne.s32.totalorder %s198, %s199
      %p211 = scmp.eq.s32.totalorder %s27, 1
      %p212 = por %p210, %p211
      %p214 = scmp.ne.s32.totalorder %s199, %s213
      %p215 = scmp.eq.s32.totalorder %s27, 0
      %p216 = por %p214, %p215
      %s217 = ssub.s32 %s21, %s28
      %p218 = scmp.eq.s32.totalorder %s217, 0
      %s220 = sadd.s32 %s219, 1
      %s221 = scalar_select %p218, %s219, %s220
      %p224 = pneg %p218
      %p225 = scmp.eq.s32.totalorder %s21, 1
      %p226 = por %p224, %p225
      %p227 = scmp.ne.s32.totalorder %s219, %s222
      %p228 = scmp.eq.s32.totalorder %s21, 0
      %p229 = por %p227, %p228
      %p230 = scmp.ne.s32.totalorder %s219, %s222
      %p231 = scmp.eq.s32.totalorder %s26, 1
      %p232 = por %p230, %p231
      %p233 = scmp.ne.s32.totalorder %s222, %s223
      %p234 = scmp.eq.s32.totalorder %s26, 0
      %p235 = por %p233, %p234
      %p236 = scmp.ne.s32.totalorder %s222, %s223
      %p237 = scmp.eq.s32.totalorder %s27, 1
      %p238 = por %p236, %p237
      %p240 = scmp.ne.s32.totalorder %s223, %s239
      %p241 = scmp.eq.s32.totalorder %s27, 0
      %p242 = por %p240, %p241
      %s243 = ssub.s32 %s21, %s28
      %p244 = scmp.eq.s32.totalorder %s243, 0
      %s246 = sadd.s32 %s245, 1
      %s247 = scalar_select %p244, %s245, %s246
      %p250 = pneg %p244
      %p251 = scmp.eq.s32.totalorder %s21, 1
      %p252 = por %p250, %p251
      %p253 = scmp.ne.s32.totalorder %s245, %s248
      %p254 = scmp.eq.s32.totalorder %s21, 0
      %p255 = por %p253, %p254
      %p256 = scmp.ne.s32.totalorder %s245, %s248
      %p257 = scmp.eq.s32.totalorder %s26, 1
      %p258 = por %p256, %p257
      %p259 = scmp.ne.s32.totalorder %s248, %s249
      %p260 = scmp.eq.s32.totalorder %s26, 0
      %p261 = por %p259, %p260
      %p262 = scmp.ne.s32.totalorder %s248, %s249
      %p263 = scmp.eq.s32.totalorder %s27, 1
      %p264 = por %p262, %p263
      %p266 = scmp.ne.s32.totalorder %s249, %s265
      %p267 = scmp.eq.s32.totalorder %s27, 0
      %p268 = por %p266, %p267
      %s270 = sadd.s32 %s269, 1
      %p273 = scmp.eq.s32.totalorder %s21, 1
      %p274 = scmp.ne.s32.totalorder %s269, %s271
      %p275 = scmp.eq.s32.totalorder %s21, 0
      %p276 = por %p274, %p275
      %p277 = scmp.ne.s32.totalorder %s269, %s271
      %p278 = scmp.eq.s32.totalorder %s26, 1
      %p279 = por %p277, %p278
      %p280 = scmp.ne.s32.totalorder %s271, %s272
      %p281 = scmp.eq.s32.totalorder %s26, 0
      %p282 = por %p280, %p281
      %p283 = scmp.ne.s32.totalorder %s271, %s272
      %p284 = scmp.eq.s32.totalorder %s27, 1
      %p285 = por %p283, %p284
      %p287 = scmp.ne.s32.totalorder %s272, %s286
      %p288 = scmp.eq.s32.totalorder %s27, 0
      %p289 = por %p287, %p288
      %s291 = sadd.s32 %s290, 1
      %p294 = scmp.eq.s32.totalorder %s21, 1
      %p295 = scmp.ne.s32.totalorder %s290, %s292
      %p296 = scmp.eq.s32.totalorder %s21, 0
      %p297 = por %p295, %p296
      %p298 = scmp.ne.s32.totalorder %s290, %s292
      %p299 = scmp.eq.s32.totalorder %s26, 1
      %p300 = por %p298, %p299
      %p301 = scmp.ne.s32.totalorder %s292, %s293
      %p302 = scmp.eq.s32.totalorder %s26, 0
      %p303 = por %p301, %p302
      %p304 = scmp.ne.s32.totalorder %s292, %s293
      %p305 = scmp.eq.s32.totalorder %s27, 1
      %p306 = por %p304, %p305
      %p308 = scmp.ne.s32.totalorder %s293, %s307
      %p309 = scmp.eq.s32.totalorder %s27, 0
      %p310 = por %p308, %p309
      %s311 = ssub.s32 %s21, %s28
      %p312 = scmp.eq.s32.totalorder %s311, 0
      %s314 = sadd.s32 %s313, 1
      %s315 = scalar_select %p312, %s313, %s314
      %p318 = pneg %p312
      %p319 = scmp.eq.s32.totalorder %s21, 1
      %p320 = por %p318, %p319
      %p321 = scmp.ne.s32.totalorder %s313, %s316
      %p322 = scmp.eq.s32.totalorder %s21, 0
      %p323 = por %p321, %p322
      %p324 = scmp.ne.s32.totalorder %s313, %s316
      %p325 = scmp.eq.s32.totalorder %s26, 1
      %p326 = por %p324, %p325
      %p327 = scmp.ne.s32.totalorder %s316, %s317
      %p328 = scmp.eq.s32.totalorder %s26, 0
      %p329 = por %p327, %p328
      %p330 = scmp.ne.s32.totalorder %s316, %s317
      %p331 = scmp.eq.s32.totalorder %s27, 1
      %p332 = por %p330, %p331
      %p334 = scmp.ne.s32.totalorder %s317, %s333
      %p335 = scmp.eq.s32.totalorder %s27, 0
      %p336 = por %p334, %p335
      %p337 = scmp.le.s32.totalorder 1, %s21
      %p338 = scmp.lt.s32.totalorder %s21, 3
      %p339 = pnand %p337, %p338
      %p340 = pneg %p339
      // Predicated region
      $region9: #{tpu_custom_call.1} parent=5 // pred_check
        _
      $region10: #{tpu_custom_call.1} parent=5 // pred_check_branch
        %342 = sbr.rel (%p339) target = $region12
      $region11: #{tpu_custom_call.1} parent=5 // pred_region
        %s343 = ssub.s32 %s21, 1
        // Predicated region
        $region13: #{tpu_custom_call.1} parent=11 // pred_check
          %p344 = pneg %p94
        $region14: #{tpu_custom_call.1} parent=11 // pred_check_branch
          %346 = sbr.rel (%p344) target = $region16
        $region15: #{tpu_custom_call.1} parent=11 // pred_region
          _
        $region16: #{tpu_custom_call.1} parent=11 // pred_fallthru
          _
        // Predicated region
        $region17: #{tpu_custom_call.1} parent=11 // pred_check
          %p347 = pneg %p115
        $region18: #{tpu_custom_call.1} parent=11 // pred_check_branch
          %349 = sbr.rel (%p347) target = $region20
        $region19: #{tpu_custom_call.1} parent=11 // pred_region
          _
        $region20: #{tpu_custom_call.1} parent=11 // pred_fallthru
          _
        // Predicated region
        $region21: #{tpu_custom_call.1} parent=11 // pred_check
          %p350 = pneg %p188
        $region22: #{tpu_custom_call.1} parent=11 // pred_check_branch
          %352 = sbr.rel (%p350) target = $region24
        $region23: #{tpu_custom_call.1} parent=11 // pred_region
          _
        $region24: #{tpu_custom_call.1} parent=11 // pred_fallthru
          _
        // Predicated region
        $region25: #{tpu_custom_call.1} parent=11 // pred_check
          %p353 = pneg %p209
        $region26: #{tpu_custom_call.1} parent=11 // pred_check_branch
          %355 = sbr.rel (%p353) target = $region28
        $region27: #{tpu_custom_call.1} parent=11 // pred_region
          _
        $region28: #{tpu_custom_call.1} parent=11 // pred_fallthru
          _
        // Predicated region
        $region29: #{tpu_custom_call.1} parent=11 // pred_check
          %p356 = pneg %p282
        $region30: #{tpu_custom_call.1} parent=11 // pred_check_branch
          %358 = sbr.rel (%p356) target = $region32
        $region31: #{tpu_custom_call.1} parent=11 // pred_region
          _
        $region32: #{tpu_custom_call.1} parent=11 // pred_fallthru
          _
        // Predicated region
        $region33: #{tpu_custom_call.1} parent=11 // pred_check
          %p359 = pneg %p303
        $region34: #{tpu_custom_call.1} parent=11 // pred_check_branch
          %361 = sbr.rel (%p359) target = $region36
        $region35: #{tpu_custom_call.1} parent=11 // pred_region
          _
        $region36: #{tpu_custom_call.1} parent=11 // pred_fallthru
          _
      $region12: #{tpu_custom_call.1} parent=5 // pred_fallthru
        _
      %p362 = scmp.lt.s32.totalorder %s21, 2
      // Predicated region
      $region37: #{tpu_custom_call.1} parent=5 // pred_check
        %p363 = pneg %p362
      $region38: #{tpu_custom_call.1} parent=5 // pred_check_branch
        %365 = sbr.rel (%p363) target = $region40
      $region39: #{tpu_custom_call.1} parent=5 // pred_region
        // Predicated region
        $region41: #{tpu_custom_call.1} parent=39 // pred_check
          %p366 = pneg %p41
        $region42: #{tpu_custom_call.1} parent=39 // pred_check_branch
          %368 = sbr.rel (%p366) target = $region44
        $region43: #{tpu_custom_call.1} parent=39 // pred_region
          %p369 = scmp.lt.s32.totalorder %s21, 1
          %s370 = scalar_select %p369, %s21, 1
          %s371 = smul.addr %s370, 4
          %s372 = smul.addr %s371, 8
          %s373 = scalar_lea.vmem %s0, %s372
        $region44: #{tpu_custom_call.1} parent=39 // pred_fallthru
          _
        // Predicated region
        $region45: #{tpu_custom_call.1} parent=39 // pred_check
          %p374 = pneg %p67
        $region46: #{tpu_custom_call.1} parent=39 // pred_check_branch
          %376 = sbr.rel (%p374) target = $region48
        $region47: #{tpu_custom_call.1} parent=39 // pred_region
          %p377 = scmp.lt.s32.totalorder %s21, 1
          %s378 = scalar_select %p377, %s21, 1
          %s379 = smul.addr %s378, 4
          %s380 = smul.addr %s379, 8
          %s381 = scalar_lea.vmem %s1, %s380
        $region48: #{tpu_custom_call.1} parent=39 // pred_fallthru
          _
        // Predicated region
        $region49: #{tpu_custom_call.1} parent=39 // pred_check
          %p382 = pneg %p135
        $region50: #{tpu_custom_call.1} parent=39 // pred_check_branch
          %384 = sbr.rel (%p382) target = $region52
        $region51: #{tpu_custom_call.1} parent=39 // pred_region
          %p385 = scmp.lt.s32.totalorder %s21, 1
          %s386 = scalar_select %p385, %s21, 1
          %s387 = smul.addr %s386, 8
          %s388 = smul.addr %s387, 4
          %s389 = scalar_lea.vmem %s4, %s388
        $region52: #{tpu_custom_call.1} parent=39 // pred_fallthru
          _
        // Predicated region
        $region53: #{tpu_custom_call.1} parent=39 // pred_check
          %p390 = pneg %p161
        $region54: #{tpu_custom_call.1} parent=39 // pred_check_branch
          %392 = sbr.rel (%p390) target = $region56
        $region55: #{tpu_custom_call.1} parent=39 // pred_region
          %p393 = scmp.lt.s32.totalorder %s21, 1
          %s394 = scalar_select %p393, %s21, 1
          %s395 = smul.addr %s394, 8
          %s396 = smul.addr %s395, 4
          %s397 = scalar_lea.vmem %s5, %s396
        $region56: #{tpu_custom_call.1} parent=39 // pred_fallthru
          _
        // Predicated region
        $region57: #{tpu_custom_call.1} parent=39 // pred_check
          %p398 = pneg %p229
        $region58: #{tpu_custom_call.1} parent=39 // pred_check_branch
          %400 = sbr.rel (%p398) target = $region60
        $region59: #{tpu_custom_call.1} parent=39 // pred_region
          %p401 = scmp.lt.s32.totalorder %s21, 1
          %s402 = scalar_select %p401, %s21, 1
          %s403 = smul.addr %s402, 16
          %s404 = smul.addr %s403, 2
          %s405 = scalar_lea.vmem %s8, %s404
        $region60: #{tpu_custom_call.1} parent=39 // pred_fallthru
          _
        // Predicated region
        $region61: #{tpu_custom_call.1} parent=39 // pred_check
          %p406 = pneg %p255
        $region62: #{tpu_custom_call.1} parent=39 // pred_check_branch
          %408 = sbr.rel (%p406) target = $region64
        $region63: #{tpu_custom_call.1} parent=39 // pred_region
          %p409 = scmp.lt.s32.totalorder %s21, 1
          %s410 = scalar_select %p409, %s21, 1
          %s411 = smul.addr %s410, 16
          %s412 = smul.addr %s411, 2
          %s413 = scalar_lea.vmem %s9, %s412
        $region64: #{tpu_custom_call.1} parent=39 // pred_fallthru
          _
      $region40: #{tpu_custom_call.1} parent=5 // pred_fallthru
        _
      %p414 = scmp.le.s32.totalorder 1, %s21
      %p415 = scmp.lt.s32.totalorder %s21, 3
      %p416 = pnand %p414, %p415
      %p417 = pneg %p416
      // Predicated region
      $region65: #{tpu_custom_call.1} parent=5 // pred_check
        _
      $region66: #{tpu_custom_call.1} parent=5 // pred_check_branch
        %419 = sbr.rel (%p416) target = $region68
      $region67: #{tpu_custom_call.1} parent=5 // pred_region
        %s420 = ssub.s32 %s21, 1
        %p421 = scmp.lt.s32.totalorder %s26, 1
        %s422 = scalar_select %p421, %s26, 1
        %s423 = smul.addr %s422, 4
        %s424 = smul.addr %s423, 8
        %s425 = scalar_lea.vmem %s0, %s424
        %p426 = pneg %p47
        %p427 = pneg %p44
        %p428 = scmp.lt.s32.totalorder %s26, 1
        %s429 = scalar_select %p428, %s26, 1
        %s430 = smul.addr %s429, 4
        %s431 = smul.addr %s430, 8
        %s432 = scalar_lea.vmem %s1, %s431
        %p433 = pneg %p73
        %p434 = pneg %p70
        %p435 = pneg %p94
        %p436 = pneg %p91
        %p437 = pneg %p115
        %p438 = pneg %p112
        %p439 = scmp.lt.s32.totalorder %s26, 1
        %s440 = scalar_select %p439, %s26, 1
        %s441 = smul.addr %s440, 8
        %s442 = smul.addr %s441, 4
        %s443 = scalar_lea.vmem %s4, %s442
        %p444 = pneg %p141
        %p445 = pneg %p138
        %p446 = scmp.lt.s32.totalorder %s26, 1
        %s447 = scalar_select %p446, %s26, 1
        %s448 = smul.addr %s447, 8
        %s449 = smul.addr %s448, 4
        %s450 = scalar_lea.vmem %s5, %s449
        %p451 = pneg %p167
        %p452 = pneg %p164
        %p453 = pneg %p188
        %p454 = pneg %p185
        %p455 = pneg %p209
        %p456 = pneg %p206
        %p457 = scmp.lt.s32.totalorder %s26, 1
        %s458 = scalar_select %p457, %s26, 1
        %s459 = smul.addr %s458, 16
        %s460 = smul.addr %s459, 2
        %s461 = scalar_lea.vmem %s8, %s460
        %p462 = pneg %p235
        %p463 = pneg %p232
        %p464 = scmp.lt.s32.totalorder %s26, 1
        %s465 = scalar_select %p464, %s26, 1
        %s466 = smul.addr %s465, 16
        %s467 = smul.addr %s466, 2
        %s468 = scalar_lea.vmem %s9, %s467
        %p469 = pneg %p261
        %p470 = pneg %p258
        %p471 = pneg %p282
        %p472 = pneg %p279
        %p473 = pneg %p303
        %p474 = pneg %p300
        %p475 = pneg %p329
        %p476 = pneg %p326
        %s477 = sand.u32 %s316, 1
        %s478 = scalar_lea.sflag [#allocation3], %s477
        %s479 = sand.u32 %s316, 1
        %s480 = smul.addr %s479, 16
        %s481 = scalar_lea.vmem [#allocation2], %s480
        %p482 = scmp.lt.s32.totalorder %s26, 1
        %s483 = scalar_select %p482, %s26, 1
        %s484 = smul.addr %s483, 4
        %s485 = smul.addr %s484, 8
        %s486 = scalar_lea.vmem %s0, %s485
        %p487 = scmp.lt.s32.totalorder %s26, 1
        %s488 = scalar_select %p487, %s26, 1
        %s489 = smul.addr %s488, 4
        %s490 = smul.addr %s489, 8
        %s491 = scalar_lea.vmem %s1, %s490
        %p492 = scmp.lt.s32.totalorder %s26, 1
        %s493 = scalar_select %p492, %s26, 1
        %s494 = smul.addr %s493, 8
        %s495 = smul.addr %s494, 4
        %s496 = scalar_lea.vmem %s4, %s495
        %p497 = scmp.lt.s32.totalorder %s26, 1
        %s498 = scalar_select %p497, %s26, 1
        %s499 = smul.addr %s498, 8
        %s500 = smul.addr %s499, 4
        %s501 = scalar_lea.vmem %s5, %s500
        %p502 = scmp.lt.s32.totalorder %s26, 1
        %s503 = scalar_select %p502, %s26, 1
        %s504 = smul.addr %s503, 16
        %s505 = smul.addr %s504, 2
        %s506 = scalar_lea.vmem %s8, %s505
        %p507 = scmp.lt.s32.totalorder %s26, 1
        %s508 = scalar_select %p507, %s26, 1
        %s509 = smul.addr %s508, 16
        %s510 = smul.addr %s509, 2
        %s511 = scalar_lea.vmem %s9, %s510
        %v512 = vld [vmem:[%s486] sm:$0xff]
        %v513 = vld [vmem:[%s486 + $0x8] sm:$0xff]
        %v514 = vld [vmem:[%s486 + $0x10] sm:$0xff]
        %v515 = vld [vmem:[%s486 + $0x18] sm:$0xff]
        %v516 = vld [vmem:[%s491] sm:$0xff]
        %v517 = vld [vmem:[%s491 + $0x8] sm:$0xff]
        %v518 = vld [vmem:[%s491 + $0x10] sm:$0xff]
        %v519 = vld [vmem:[%s491 + $0x18] sm:$0xff]
        %v520 = vmul.f32 %v512, %v516
        %v521 = vmul.f32 %v513, %v517
        %v522 = vmul.f32 %v514, %v518
        %v523 = vmul.f32 %v515, %v519
        %vm524 = vcmask 64512
        %v525 = vsel %vm524, %v520, 0.0
        %v526 = vsel %vm524, %v521, 0.0
        %v527 = vadd.f32 %v525, %v526
        %v528 = vsel %vm524, %v522, 0.0
        %v529 = vadd.f32 %v527, %v528
        %v530 = vsel %vm524, %v523, 0.0
        %v531 = vadd.f32 %v529, %v530
        %v532 = vmul.f32 %v512, %v512
        %v533 = vmul.f32 %v513, %v513
        %v534 = vmul.f32 %v514, %v514
        %v535 = vmul.f32 %v515, %v515
        %v536 = vsel %vm524, %v532, 0.0
        %v537 = vsel %vm524, %v533, 0.0
        %v538 = vadd.f32 %v536, %v537
        %v539 = vsel %vm524, %v534, 0.0
        %v540 = vadd.f32 %v538, %v539
        %v541 = vsel %vm524, %v535, 0.0
        %v542 = vadd.f32 %v540, %v541
        %v543 = vmul.f32 %v516, %v516
        %v544 = vmul.f32 %v517, %v517
        %v545 = vmul.f32 %v518, %v518
        %v546 = vmul.f32 %v519, %v519
        %v547 = vsel %vm524, %v543, 0.0
        %v548 = vsel %vm524, %v544, 0.0
        %v549 = vadd.f32 %v547, %v548
        %v550 = vsel %vm524, %v545, 0.0
        %v551 = vadd.f32 %v549, %v550
        %v552 = vsel %vm524, %v546, 0.0
        %v553 = vadd.f32 %v551, %v552
        %v554 = vmul.f32 %v542, %v553
        %v555 = vmax.f32 %v554, 1e-16
        %v556 = vrsqrt.pop %v555
        %v557 = vmul.f32 %v531, %v556
        %v558 = vsub.f32 1.0, %v557
        %v559 = vld [vmem:[%s2] sm:$0xff]
        %v560 = vld [vmem:[%s2 + $0x8] sm:$0xff]
        %v562 = vsel %vm524, %v559, 0
        %v565 = vsel %vm524, %v560, 0
        %567 = vmatprep.subr.mxu0 0.0
        %568 = vmatpush1.msra.mxu0 %v558
        %569 = vmatprep.subr.mxu0 0.0
        %570 = vmatpush1.msra.mxu0 0.0
        %571 = vmatprep.subr.mxu0 0.0
        %572 = vmatpush1.msra.mxu0 0.0
        %573 = vmatprep.subr.mxu0 0.0
        %574 = vmatpush1.msra.mxu0 0.0
        %575 = vmatprep.subr.mxu0 0.0
        %576 = vmatpush1.msra.mxu0 0.0
        %577 = vmatprep.subr.mxu0 0.0
        %578 = vmatpush1.msra.mxu0 0.0
        %579 = vmatprep.subr.mxu0 0.0
        %580 = vmatpush1.msra.mxu0 0.0
        %581 = vmatprep.subr.mxu0 0.0
        %582 = vmatpush1.msra.mxu0 0.0
        %583 = vmatprep.subr.mxu0 0.0
        %584 = vmatpush1.msra.mxu0 0.0
        %585 = vmatprep.subr.mxu0 0.0
        %586 = vmatpush1.msra.mxu0 0.0
        %587 = vmatprep.subr.mxu0 0.0
        %588 = vmatpush1.msra.mxu0 0.0
        %589 = vmatprep.subr.mxu0 0.0
        %590 = vmatpush1.msra.mxu0 0.0
        %591 = vmatprep.subr.mxu0 0.0
        %592 = vmatpush1.msra.mxu0 0.0
        %593 = vmatprep.subr.mxu0 0.0
        %594 = vmatpush1.msra.mxu0 0.0
        %595 = vmatprep.subr.mxu0 0.0
        %596 = vmatpush1.msra.mxu0 0.0
        %597 = vmatprep.subr.mxu0 0.0
        %598 = vmatpush1.msra.mxu0 0.0
        %599 = vmatprep.subr.mxu0 0.0
        %600 = vmatpush1.msra.mxu0 0.0
        %601 = vmatprep.subr.mxu0 0.0
        %602 = vmatpush1.msra.mxu0 0.0
        %603 = vmatprep.subr.mxu0 0.0
        %604 = vmatpush1.msra.mxu0 0.0
        %605 = vmatprep.subr.mxu0 0.0
        %606 = vmatpush1.msra.mxu0 0.0
        %607 = vmatprep.subr.mxu0 0.0
        %608 = vmatpush1.msra.mxu0 0.0
        %609 = vmatprep.subr.mxu0 0.0
        %610 = vmatpush1.msra.mxu0 0.0
        %611 = vmatprep.subr.mxu0 0.0
        %612 = vmatpush1.msra.mxu0 0.0
        %613 = vmatprep.subr.mxu0 0.0
        %614 = vmatpush1.msra.mxu0 0.0
        %615 = vmatprep.subr.mxu0 0.0
        %616 = vmatpush1.msra.mxu0 0.0
        %617 = vmatprep.subr.mxu0 0.0
        %618 = vmatpush1.msra.mxu0 0.0
        %619 = vmatprep.subr.mxu0 0.0
        %620 = vmatpush1.msra.mxu0 0.0
        %621 = vmatprep.subr.mxu0 0.0
        %622 = vmatpush1.msra.mxu0 0.0
        %623 = vmatprep.subr.mxu0 0.0
        %624 = vmatpush1.msra.mxu0 0.0
        %625 = vmatprep.subr.mxu0 0.0
        %626 = vmatpush1.msra.mxu0 0.0
        %627 = vmatprep.subr.mxu0 0.0
        %628 = vmatpush1.msra.mxu0 0.0
        %629 = vmatprep.subr.mxu0 0.0
        %630 = vmatpush1.msra.mxu0 0.0
        %631 = vmatprep.mubr.f32.mxu0 0.0
        %632 = vmatmul.mubr.f32.gmra.mrb[0].mxu0 %v562
        %v633 = vpop.f32.mrb[0].mxu0
        %v634 = vadd.f32 0.0, %v633
        %v635 = vpop.f32.mrb[0].mxu0
        %636 = vmatprep.mubr.f32.mxu0 0.0
        %637 = vmatmul.mubr.f32.gmra.mrb[0].mxu0 %v565
        %v638 = vpop.f32.mrb[0].mxu0
        %v639 = vadd.f32 0.0, %v638
        %v640 = vpop.f32.mrb[0].mxu0
        %641 = vdwg.mxu0
        %v642 = vld [vmem:[%s3] sm:$0xff]
        %v643 = vld [vmem:[%s496] sm:$0xf]
        %v644 = vld [vmem:[%s496 + $0x4] sm:$0xf]
        %v645 = vld [vmem:[%s496 + $0x8] sm:$0xf]
        %v646 = vld [vmem:[%s496 + $0xc] sm:$0xf]
        %v647 = vld [vmem:[%s496 + $0x10] sm:$0xf]
        %v648 = vld [vmem:[%s496 + $0x14] sm:$0xf]
        %v649 = vld [vmem:[%s496 + $0x18] sm:$0xf]
        %v650 = vld [vmem:[%s496 + $0x1c] sm:$0xf]
        %v651 = vld [vmem:[%s501] sm:$0xf]
        %v652 = vld [vmem:[%s501 + $0x4] sm:$0xf]
        %v653 = vld [vmem:[%s501 + $0x8] sm:$0xf]
        %v654 = vld [vmem:[%s501 + $0xc] sm:$0xf]
        %v655 = vld [vmem:[%s501 + $0x10] sm:$0xf]
        %v656 = vld [vmem:[%s501 + $0x14] sm:$0xf]
        %v657 = vld [vmem:[%s501 + $0x18] sm:$0xf]
        %v658 = vld [vmem:[%s501 + $0x1c] sm:$0xf]
        %v659 = vmul.f32 %v643, %v651
        %v660 = vmul.f32 %v644, %v652
        %v661 = vmul.f32 %v645, %v653
        %v662 = vmul.f32 %v646, %v654
        %v663 = vmul.f32 %v647, %v655
        %v664 = vmul.f32 %v648, %v656
        %v665 = vmul.f32 %v649, %v657
        %v666 = vmul.f32 %v650, %v658
        %vm667 = vcmask 27648
        %v668 = vsel %vm667, %v659, 0.0
        %v669 = vsel %vm667, %v660, 0.0
        %v670 = vadd.f32 %v668, %v669
        %v671 = vsel %vm667, %v661, 0.0
        %v672 = vadd.f32 %v670, %v671
        %v673 = vsel %vm667, %v662, 0.0
        %v674 = vadd.f32 %v672, %v673
        %v675 = vsel %vm667, %v663, 0.0
        %v676 = vadd.f32 %v674, %v675
        %v677 = vsel %vm667, %v664, 0.0
        %v678 = vadd.f32 %v676, %v677
        %v679 = vsel %vm667, %v665, 0.0
        %v680 = vadd.f32 %v678, %v679
        %v681 = vsel %vm667, %v666, 0.0
        %v682 = vadd.f32 %v680, %v681
        %v683 = vmul.f32 %v643, %v643
        %v684 = vmul.f32 %v644, %v644
        %v685 = vmul.f32 %v645, %v645
        %v686 = vmul.f32 %v646, %v646
        %v687 = vmul.f32 %v647, %v647
        %v688 = vmul.f32 %v648, %v648
        %v689 = vmul.f32 %v649, %v649
        %v690 = vmul.f32 %v650, %v650
        %v691 = vsel %vm667, %v683, 0.0
        %v692 = vsel %vm667, %v684, 0.0
        %v693 = vadd.f32 %v691, %v692
        %v694 = vsel %vm667, %v685, 0.0
        %v695 = vadd.f32 %v693, %v694
        %v696 = vsel %vm667, %v686, 0.0
        %v697 = vadd.f32 %v695, %v696
        %v698 = vsel %vm667, %v687, 0.0
        %v699 = vadd.f32 %v697, %v698
        %v700 = vsel %vm667, %v688, 0.0
        %v701 = vadd.f32 %v699, %v700
        %v702 = vsel %vm667, %v689, 0.0
        %v703 = vadd.f32 %v701, %v702
        %v704 = vsel %vm667, %v690, 0.0
        %v705 = vadd.f32 %v703, %v704
        %v706 = vmul.f32 %v651, %v651
        %v707 = vmul.f32 %v652, %v652
        %v708 = vmul.f32 %v653, %v653
        %v709 = vmul.f32 %v654, %v654
        %v710 = vmul.f32 %v655, %v655
        %v711 = vmul.f32 %v656, %v656
        %v712 = vmul.f32 %v657, %v657
        %v713 = vmul.f32 %v658, %v658
        %v714 = vsel %vm667, %v706, 0.0
        %v715 = vsel %vm667, %v707, 0.0
        %v716 = vadd.f32 %v714, %v715
        %v717 = vsel %vm667, %v708, 0.0
        %v718 = vadd.f32 %v716, %v717
        %v719 = vsel %vm667, %v709, 0.0
        %v720 = vadd.f32 %v718, %v719
        %v721 = vsel %vm667, %v710, 0.0
        %v722 = vadd.f32 %v720, %v721
        %v723 = vsel %vm667, %v711, 0.0
        %v724 = vadd.f32 %v722, %v723
        %v725 = vsel %vm667, %v712, 0.0
        %v726 = vadd.f32 %v724, %v725
        %v727 = vsel %vm667, %v713, 0.0
        %v728 = vadd.f32 %v726, %v727
        %v729 = vmul.f32 %v705, %v728
        %v730 = vmax.f32 %v729, 1e-16
        %v731 = vrsqrt.pop %v730
        %v732 = vmul.f32 %v682, %v731
        %v733 = vsub.f32 1.0, %v732
        %v734 = vld [vmem:[%s6] sm:$0xff]
        %v735 = vld [vmem:[%s6 + $0x8] sm:$0xff]
        %vm736 = vcmask 31744
        %v738 = vsel %vm736, %v734, 0
        %v741 = vsel %vm736, %v735, 0
        %vm743 = vcmask 1043456
        %v745 = vsel %vm743, %v733, 0
        %747 = vmatprep.subr.mxu0 0.0
        %748 = vmatpush1.msra.mxu0 %v745
        %749 = vmatprep.subr.mxu0 0.0
        %750 = vmatpush1.msra.mxu0 0.0
        %751 = vmatprep.subr.mxu0 0.0
        %752 = vmatpush1.msra.mxu0 0.0
        %753 = vmatprep.subr.mxu0 0.0
        %754 = vmatpush1.msra.mxu0 0.0
        %755 = vmatprep.subr.mxu0 0.0
        %756 = vmatpush1.msra.mxu0 0.0
        %757 = vmatprep.subr.mxu0 0.0
        %758 = vmatpush1.msra.mxu0 0.0
        %759 = vmatprep.subr.mxu0 0.0
        %760 = vmatpush1.msra.mxu0 0.0
        %761 = vmatprep.subr.mxu0 0.0
        %762 = vmatpush1.msra.mxu0 0.0
        %763 = vmatprep.subr.mxu0 0.0
        %764 = vmatpush1.msra.mxu0 0.0
        %765 = vmatprep.subr.mxu0 0.0
        %766 = vmatpush1.msra.mxu0 0.0
        %767 = vmatprep.subr.mxu0 0.0
        %768 = vmatpush1.msra.mxu0 0.0
        %769 = vmatprep.subr.mxu0 0.0
        %770 = vmatpush1.msra.mxu0 0.0
        %771 = vmatprep.subr.mxu0 0.0
        %772 = vmatpush1.msra.mxu0 0.0
        %773 = vmatprep.subr.mxu0 0.0
        %774 = vmatpush1.msra.mxu0 0.0
        %775 = vmatprep.subr.mxu0 0.0
        %776 = vmatpush1.msra.mxu0 0.0
        %777 = vmatprep.subr.mxu0 0.0
        %778 = vmatpush1.msra.mxu0 0.0
        %779 = vmatprep.subr.mxu0 0.0
        %780 = vmatpush1.msra.mxu0 0.0
        %781 = vmatprep.subr.mxu0 0.0
        %782 = vmatpush1.msra.mxu0 0.0
        %783 = vmatprep.subr.mxu0 0.0
        %784 = vmatpush1.msra.mxu0 0.0
        %785 = vmatprep.subr.mxu0 0.0
        %786 = vmatpush1.msra.mxu0 0.0
        %787 = vmatprep.subr.mxu0 0.0
        %788 = vmatpush1.msra.mxu0 0.0
        %789 = vmatprep.subr.mxu0 0.0
        %790 = vmatpush1.msra.mxu0 0.0
        %791 = vmatprep.subr.mxu0 0.0
        %792 = vmatpush1.msra.mxu0 0.0
        %793 = vmatprep.subr.mxu0 0.0
        %794 = vmatpush1.msra.mxu0 0.0
        %795 = vmatprep.subr.mxu0 0.0
        %796 = vmatpush1.msra.mxu0 0.0
        %797 = vmatprep.subr.mxu0 0.0
        %798 = vmatpush1.msra.mxu0 0.0
        %799 = vmatprep.subr.mxu0 0.0
        %800 = vmatpush1.msra.mxu0 0.0
        %801 = vmatprep.subr.mxu0 0.0
        %802 = vmatpush1.msra.mxu0 0.0
        %803 = vmatprep.subr.mxu0 0.0
        %804 = vmatpush1.msra.mxu0 0.0
        %805 = vmatprep.subr.mxu0 0.0
        %806 = vmatpush1.msra.mxu0 0.0
        %807 = vmatprep.subr.mxu0 0.0
        %808 = vmatpush1.msra.mxu0 0.0
        %809 = vmatprep.subr.mxu0 0.0
        %810 = vmatpush1.msra.mxu0 0.0
        %811 = vmatprep.mubr.f32.mxu0 0.0
        %812 = vmatmul.mubr.f32.gmra.mrb[0].mxu0 %v738
        %v813 = vpop.f32.mrb[0].mxu0
        %v814 = vadd.f32 0.0, %v813
        %v815 = vpop.f32.mrb[0].mxu0
        %816 = vmatprep.mubr.f32.mxu0 0.0
        %817 = vmatmul.mubr.f32.gmra.mrb[0].mxu0 %v741
        %v818 = vpop.f32.mrb[0].mxu0
        %v819 = vadd.f32 0.0, %v818
        %v820 = vpop.f32.mrb[0].mxu0
        %821 = vdwg.mxu0
        %v822 = vld [vmem:[%s7] sm:$0xf]
        %v824 = vsel %vm736, %v814, 0
        %v827 = vsel %vm736, %v819, 0
        %v830 = vsel %vm743, %v822, 0
        %832 = vmatprep.subr.mxu0 0.0
        %833 = vmatpush1.msra.mxu0 %v830
        %834 = vmatprep.subr.mxu0 0.0
        %835 = vmatpush1.msra.mxu0 0.0
        %836 = vmatprep.subr.mxu0 0.0
        %837 = vmatpush1.msra.mxu0 0.0
        %838 = vmatprep.subr.mxu0 0.0
        %839 = vmatpush1.msra.mxu0 0.0
        %840 = vmatprep.subr.mxu0 0.0
        %841 = vmatpush1.msra.mxu0 0.0
        %842 = vmatprep.subr.mxu0 0.0
        %843 = vmatpush1.msra.mxu0 0.0
        %844 = vmatprep.subr.mxu0 0.0
        %845 = vmatpush1.msra.mxu0 0.0
        %846 = vmatprep.subr.mxu0 0.0
        %847 = vmatpush1.msra.mxu0 0.0
        %848 = vmatprep.subr.mxu0 0.0
        %849 = vmatpush1.msra.mxu0 0.0
        %850 = vmatprep.subr.mxu0 0.0
        %851 = vmatpush1.msra.mxu0 0.0
        %852 = vmatprep.subr.mxu0 0.0
        %853 = vmatpush1.msra.mxu0 0.0
        %854 = vmatprep.subr.mxu0 0.0
        %855 = vmatpush1.msra.mxu0 0.0
        %856 = vmatprep.subr.mxu0 0.0
        %857 = vmatpush1.msra.mxu0 0.0
        %858 = vmatprep.subr.mxu0 0.0
        %859 = vmatpush1.msra.mxu0 0.0
        %860 = vmatprep.subr.mxu0 0.0
        %861 = vmatpush1.msra.mxu0 0.0
        %862 = vmatprep.subr.mxu0 0.0
        %863 = vmatpush1.msra.mxu0 0.0
        %864 = vmatprep.subr.mxu0 0.0
        %865 = vmatpush1.msra.mxu0 0.0
        %866 = vmatprep.subr.mxu0 0.0
        %867 = vmatpush1.msra.mxu0 0.0
        %868 = vmatprep.subr.mxu0 0.0
        %869 = vmatpush1.msra.mxu0 0.0
        %870 = vmatprep.subr.mxu0 0.0
        %871 = vmatpush1.msra.mxu0 0.0
        %872 = vmatprep.subr.mxu0 0.0
        %873 = vmatpush1.msra.mxu0 0.0
        %874 = vmatprep.subr.mxu0 0.0
        %875 = vmatpush1.msra.mxu0 0.0
        %876 = vmatprep.subr.mxu0 0.0
        %877 = vmatpush1.msra.mxu0 0.0
        %878 = vmatprep.subr.mxu0 0.0
        %879 = vmatpush1.msra.mxu0 0.0
        %880 = vmatprep.subr.mxu0 0.0
        %881 = vmatpush1.msra.mxu0 0.0
        %882 = vmatprep.subr.mxu0 0.0
        %883 = vmatpush1.msra.mxu0 0.0
        %884 = vmatprep.subr.mxu0 0.0
        %885 = vmatpush1.msra.mxu0 0.0
        %886 = vmatprep.subr.mxu0 0.0
        %887 = vmatpush1.msra.mxu0 0.0
        %888 = vmatprep.subr.mxu0 0.0
        %889 = vmatpush1.msra.mxu0 0.0
        %890 = vmatprep.subr.mxu0 0.0
        %891 = vmatpush1.msra.mxu0 0.0
        %892 = vmatprep.subr.mxu0 0.0
        %893 = vmatpush1.msra.mxu0 0.0
        %894 = vmatprep.subr.mxu0 0.0
        %895 = vmatpush1.msra.mxu0 0.0
        %896 = vmatprep.mubr.f32.mxu0 0.0
        %897 = vmatmul.mubr.f32.gmra.mrb[0].mxu0 %v824
        %v898 = vpop.f32.mrb[0].mxu0
        %v899 = vadd.f32 0.0, %v898
        %v900 = vpop.f32.mrb[0].mxu0
        %901 = vmatprep.mubr.f32.mxu0 0.0
        %902 = vmatmul.mubr.f32.gmra.mrb[0].mxu0 %v827
        %v903 = vpop.f32.mrb[0].mxu0
        %v904 = vadd.f32 0.0, %v903
        %v905 = vpop.f32.mrb[0].mxu0
        %906 = vdwg.mxu0
        %v908 = vsel %vm524, %v634, 0
        %v911 = vsel %vm524, %v639, 0
        %913 = vmatprep.subr.mxu0 0.0
        %914 = vmatpush1.msra.mxu0 %v642
        %915 = vmatprep.subr.mxu0 0.0
        %916 = vmatpush1.msra.mxu0 0.0
        %917 = vmatprep.subr.mxu0 0.0
        %918 = vmatpush1.msra.mxu0 0.0
        %919 = vmatprep.subr.mxu0 0.0
        %920 = vmatpush1.msra.mxu0 0.0
        %921 = vmatprep.subr.mxu0 0.0
        %922 = vmatpush1.msra.mxu0 0.0
        %923 = vmatprep.subr.mxu0 0.0
        %924 = vmatpush1.msra.mxu0 0.0
        %925 = vmatprep.subr.mxu0 0.0
        %926 = vmatpush1.msra.mxu0 0.0
        %927 = vmatprep.subr.mxu0 0.0
        %928 = vmatpush1.msra.mxu0 0.0
        %929 = vmatprep.subr.mxu0 0.0
        %930 = vmatpush1.msra.mxu0 0.0
        %931 = vmatprep.subr.mxu0 0.0
        %932 = vmatpush1.msra.mxu0 0.0
        %933 = vmatprep.subr.mxu0 0.0
        %934 = vmatpush1.msra.mxu0 0.0
        %935 = vmatprep.subr.mxu0 0.0
        %936 = vmatpush1.msra.mxu0 0.0
        %937 = vmatprep.subr.mxu0 0.0
        %938 = vmatpush1.msra.mxu0 0.0
        %939 = vmatprep.subr.mxu0 0.0
        %940 = vmatpush1.msra.mxu0 0.0
        %941 = vmatprep.subr.mxu0 0.0
        %942 = vmatpush1.msra.mxu0 0.0
        %943 = vmatprep.subr.mxu0 0.0
        %944 = vmatpush1.msra.mxu0 0.0
        %945 = vmatprep.subr.mxu0 0.0
        %946 = vmatpush1.msra.mxu0 0.0
        %947 = vmatprep.subr.mxu0 0.0
        %948 = vmatpush1.msra.mxu0 0.0
        %949 = vmatprep.subr.mxu0 0.0
        %950 = vmatpush1.msra.mxu0 0.0
        %951 = vmatprep.subr.mxu0 0.0
        %952 = vmatpush1.msra.mxu0 0.0
        %953 = vmatprep.subr.mxu0 0.0
        %954 = vmatpush1.msra.mxu0 0.0
        %955 = vmatprep.subr.mxu0 0.0
        %956 = vmatpush1.msra.mxu0 0.0
        %957 = vmatprep.subr.mxu0 0.0
        %958 = vmatpush1.msra.mxu0 0.0
        %959 = vmatprep.subr.mxu0 0.0
        %960 = vmatpush1.msra.mxu0 0.0
        %961 = vmatprep.subr.mxu0 0.0
        %962 = vmatpush1.msra.mxu0 0.0
        %963 = vmatprep.subr.mxu0 0.0
        %964 = vmatpush1.msra.mxu0 0.0
        %965 = vmatprep.subr.mxu0 0.0
        %966 = vmatpush1.msra.mxu0 0.0
        %967 = vmatprep.subr.mxu0 0.0
        %968 = vmatpush1.msra.mxu0 0.0
        %969 = vmatprep.subr.mxu0 0.0
        %970 = vmatpush1.msra.mxu0 0.0
        %971 = vmatprep.subr.mxu0 0.0
        %972 = vmatpush1.msra.mxu0 0.0
        %973 = vmatprep.subr.mxu0 0.0
        %974 = vmatpush1.msra.mxu0 0.0
        %975 = vmatprep.subr.mxu0 0.0
        %976 = vmatpush1.msra.mxu0 0.0
        %977 = vmatprep.mubr.f32.mxu0 0.0
        %978 = vmatmul.mubr.f32.gmra.mrb[0].mxu0 %v908
        %v979 = vpop.f32.mrb[0].mxu0
        %v980 = vadd.f32 %v899, %v979
        %v981 = vpop.f32.mrb[0].mxu0
        %982 = vmatprep.mubr.f32.mxu0 0.0
        %983 = vmatmul.mubr.f32.gmra.mrb[0].mxu0 %v911
        %v984 = vpop.f32.mrb[0].mxu0
        %v985 = vadd.f32 %v904, %v984
        %v986 = vpop.f32.mrb[0].mxu0
        %987 = vdwg.mxu0
        %v988 = vld [vmem:[%s506] sm:$0x3]
        %v989 = vld [vmem:[%s506 + $0x2] sm:$0x3]
        %v990 = vld [vmem:[%s506 + $0x4] sm:$0x3]
        %v991 = vld [vmem:[%s506 + $0x6] sm:$0x3]
        %v992 = vld [vmem:[%s506 + $0x8] sm:$0x3]
        %v993 = vld [vmem:[%s506 + $0xa] sm:$0x3]
        %v994 = vld [vmem:[%s506 + $0xc] sm:$0x3]
        %v995 = vld [vmem:[%s506 + $0xe] sm:$0x3]
        %v996 = vld [vmem:[%s506 + $0x10] sm:$0x3]
        %v997 = vld [vmem:[%s506 + $0x12] sm:$0x3]
        %v998 = vld [vmem:[%s506 + $0x14] sm:$0x3]
        %v999 = vld [vmem:[%s506 + $0x16] sm:$0x3]
        %v1000 = vld [vmem:[%s506 + $0x18] sm:$0x3]
        %v1001 = vld [vmem:[%s506 + $0x1a] sm:$0x3]
        %v1002 = vld [vmem:[%s506 + $0x1c] sm:$0x3]
        %v1003 = vld [vmem:[%s506 + $0x1e] sm:$0x3]
        %v1004 = vld [vmem:[%s511] sm:$0x3]
        %v1005 = vld [vmem:[%s511 + $0x2] sm:$0x3]
        %v1006 = vld [vmem:[%s511 + $0x4] sm:$0x3]
        %v1007 = vld [vmem:[%s511 + $0x6] sm:$0x3]
        %v1008 = vld [vmem:[%s511 + $0x8] sm:$0x3]
        %v1009 = vld [vmem:[%s511 + $0xa] sm:$0x3]
        %v1010 = vld [vmem:[%s511 + $0xc] sm:$0x3]
        %v1011 = vld [vmem:[%s511 + $0xe] sm:$0x3]
        %v1012 = vld [vmem:[%s511 + $0x10] sm:$0x3]
        %v1013 = vld [vmem:[%s511 + $0x12] sm:$0x3]
        %v1014 = vld [vmem:[%s511 + $0x14] sm:$0x3]
        %v1015 = vld [vmem:[%s511 + $0x16] sm:$0x3]
        %v1016 = vld [vmem:[%s511 + $0x18] sm:$0x3]
        %v1017 = vld [vmem:[%s511 + $0x1a] sm:$0x3]
        %v1018 = vld [vmem:[%s511 + $0x1c] sm:$0x3]
        %v1019 = vld [vmem:[%s511 + $0x1e] sm:$0x3]
        %v1020 = vmul.f32 %v988, %v1004
        %v1021 = vmul.f32 %v989, %v1005
        %v1022 = vmul.f32 %v990, %v1006
        %v1023 = vmul.f32 %v991, %v1007
        %v1024 = vmul.f32 %v992, %v1008
        %v1025 = vmul.f32 %v993, %v1009
        %v1026 = vmul.f32 %v994, %v1010
        %v1027 = vmul.f32 %v995, %v1011
        %v1028 = vmul.f32 %v996, %v1012
        %v1029 = vmul.f32 %v997, %v1013
        %v1030 = vmul.f32 %v998, %v1014
        %v1031 = vmul.f32 %v999, %v1015
        %v1032 = vmul.f32 %v1000, %v1016
        %v1033 = vmul.f32 %v1001, %v1017
        %v1034 = vmul.f32 %v1002, %v1018
        %v1035 = vmul.f32 %v1003, %v1019
        %vm1036 = vcmask 9216
        %v1037 = vsel %vm1036, %v1020, 0.0
        %v1038 = vsel %vm1036, %v1021, 0.0
        %v1039 = vadd.f32 %v1037, %v1038
        %v1040 = vsel %vm1036, %v1022, 0.0
        %v1041 = vadd.f32 %v1039, %v1040
        %v1042 = vsel %vm1036, %v1023, 0.0
        %v1043 = vadd.f32 %v1041, %v1042
        %v1044 = vsel %vm1036, %v1024, 0.0
        %v1045 = vadd.f32 %v1043, %v1044
        %v1046 = vsel %vm1036, %v1025, 0.0
        %v1047 = vadd.f32 %v1045, %v1046
        %v1048 = vsel %vm1036, %v1026, 0.0
        %v1049 = vadd.f32 %v1047, %v1048
        %v1050 = vsel %vm1036, %v1027, 0.0
        %v1051 = vadd.f32 %v1049, %v1050
        %v1052 = vsel %vm1036, %v1028, 0.0
        %v1053 = vadd.f32 %v1051, %v1052
        %v1054 = vsel %vm1036, %v1029, 0.0
        %v1055 = vadd.f32 %v1053, %v1054
        %v1056 = vsel %vm1036, %v1030, 0.0
        %v1057 = vadd.f32 %v1055, %v1056
        %v1058 = vsel %vm1036, %v1031, 0.0
        %v1059 = vadd.f32 %v1057, %v1058
        %v1060 = vsel %vm1036, %v1032, 0.0
        %v1061 = vadd.f32 %v1059, %v1060
        %v1062 = vsel %vm1036, %v1033, 0.0
        %v1063 = vadd.f32 %v1061, %v1062
        %v1064 = vsel %vm1036, %v1034, 0.0
        %v1065 = vadd.f32 %v1063, %v1064
        %v1066 = vsel %vm1036, %v1035, 0.0
        %v1067 = vadd.f32 %v1065, %v1066
        %v1068 = vmul.f32 %v988, %v988
        %v1069 = vmul.f32 %v989, %v989
        %v1070 = vmul.f32 %v990, %v990
        %v1071 = vmul.f32 %v991, %v991
        %v1072 = vmul.f32 %v992, %v992
        %v1073 = vmul.f32 %v993, %v993
        %v1074 = vmul.f32 %v994, %v994
        %v1075 = vmul.f32 %v995, %v995
        %v1076 = vmul.f32 %v996, %v996
        %v1077 = vmul.f32 %v997, %v997
        %v1078 = vmul.f32 %v998, %v998
        %v1079 = vmul.f32 %v999, %v999
        %v1080 = vmul.f32 %v1000, %v1000
        %v1081 = vmul.f32 %v1001, %v1001
        %v1082 = vmul.f32 %v1002, %v1002
        %v1083 = vmul.f32 %v1003, %v1003
        %v1084 = vsel %vm1036, %v1068, 0.0
        %v1085 = vsel %vm1036, %v1069, 0.0
        %v1086 = vadd.f32 %v1084, %v1085
        %v1087 = vsel %vm1036, %v1070, 0.0
        %v1088 = vadd.f32 %v1086, %v1087
        %v1089 = vsel %vm1036, %v1071, 0.0
        %v1090 = vadd.f32 %v1088, %v1089
        %v1091 = vsel %vm1036, %v1072, 0.0
        %v1092 = vadd.f32 %v1090, %v1091
        %v1093 = vsel %vm1036, %v1073, 0.0
        %v1094 = vadd.f32 %v1092, %v1093
        %v1095 = vsel %vm1036, %v1074, 0.0
        %v1096 = vadd.f32 %v1094, %v1095
        %v1097 = vsel %vm1036, %v1075, 0.0
        %v1098 = vadd.f32 %v1096, %v1097
        %v1099 = vsel %vm1036, %v1076, 0.0
        %v1100 = vadd.f32 %v1098, %v1099
        %v1101 = vsel %vm1036, %v1077, 0.0
        %v1102 = vadd.f32 %v1100, %v1101
        %v1103 = vsel %vm1036, %v1078, 0.0
        %v1104 = vadd.f32 %v1102, %v1103
        %v1105 = vsel %vm1036, %v1079, 0.0
        %v1106 = vadd.f32 %v1104, %v1105
        %v1107 = vsel %vm1036, %v1080, 0.0
        %v1108 = vadd.f32 %v1106, %v1107
        %v1109 = vsel %vm1036, %v1081, 0.0
        %v1110 = vadd.f32 %v1108, %v1109
        %v1111 = vsel %vm1036, %v1082, 0.0
        %v1112 = vadd.f32 %v1110, %v1111
        %v1113 = vsel %vm1036, %v1083, 0.0
        %v1114 = vadd.f32 %v1112, %v1113
        %v1115 = vmul.f32 %v1004, %v1004
        %v1116 = vmul.f32 %v1005, %v1005
        %v1117 = vmul.f32 %v1006, %v1006
        %v1118 = vmul.f32 %v1007, %v1007
        %v1119 = vmul.f32 %v1008, %v1008
        %v1120 = vmul.f32 %v1009, %v1009
        %v1121 = vmul.f32 %v1010, %v1010
        %v1122 = vmul.f32 %v1011, %v1011
        %v1123 = vmul.f32 %v1012, %v1012
        %v1124 = vmul.f32 %v1013, %v1013
        %v1125 = vmul.f32 %v1014, %v1014
        %v1126 = vmul.f32 %v1015, %v1015
        %v1127 = vmul.f32 %v1016, %v1016
        %v1128 = vmul.f32 %v1017, %v1017
        %v1129 = vmul.f32 %v1018, %v1018
        %v1130 = vmul.f32 %v1019, %v1019
        %v1131 = vsel %vm1036, %v1115, 0.0
        %v1132 = vsel %vm1036, %v1116, 0.0
        %v1133 = vadd.f32 %v1131, %v1132
        %v1134 = vsel %vm1036, %v1117, 0.0
        %v1135 = vadd.f32 %v1133, %v1134
        %v1136 = vsel %vm1036, %v1118, 0.0
        %v1137 = vadd.f32 %v1135, %v1136
        %v1138 = vsel %vm1036, %v1119, 0.0
        %v1139 = vadd.f32 %v1137, %v1138
        %v1140 = vsel %vm1036, %v1120, 0.0
        %v1141 = vadd.f32 %v1139, %v1140
        %v1142 = vsel %vm1036, %v1121, 0.0
        %v1143 = vadd.f32 %v1141, %v1142
        %v1144 = vsel %vm1036, %v1122, 0.0
        %v1145 = vadd.f32 %v1143, %v1144
        %v1146 = vsel %vm1036, %v1123, 0.0
        %v1147 = vadd.f32 %v1145, %v1146
        %v1148 = vsel %vm1036, %v1124, 0.0
        %v1149 = vadd.f32 %v1147, %v1148
        %v1150 = vsel %vm1036, %v1125, 0.0
        %v1151 = vadd.f32 %v1149, %v1150
        %v1152 = vsel %vm1036, %v1126, 0.0
        %v1153 = vadd.f32 %v1151, %v1152
        %v1154 = vsel %vm1036, %v1127, 0.0
        %v1155 = vadd.f32 %v1153, %v1154
        %v1156 = vsel %vm1036, %v1128, 0.0
        %v1157 = vadd.f32 %v1155, %v1156
        %v1158 = vsel %vm1036, %v1129, 0.0
        %v1159 = vadd.f32 %v1157, %v1158
        %v1160 = vsel %vm1036, %v1130, 0.0
        %v1161 = vadd.f32 %v1159, %v1160
        %v1162 = vmul.f32 %v1114, %v1161
        %v1163 = vmax.f32 %v1162, 1e-16
        %v1164 = vrsqrt.pop %v1163
        %v1165 = vmul.f32 %v1067, %v1164
        %v1166 = vsub.f32 1.0, %v1165
        %v1167 = vld [vmem:[%s10] sm:$0xff]
        %v1168 = vld [vmem:[%s10 + $0x8] sm:$0xff]
        %vm1169 = vcmask 15360
        %v1171 = vsel %vm1169, %v1167, 0
        %v1174 = vsel %vm1169, %v1168, 0
        %vm1176 = vcmask 1041408
        %v1178 = vsel %vm1176, %v1166, 0
        %1180 = vmatprep.subr.mxu0 0.0
        %1181 = vmatpush1.msra.mxu0 %v1178
        %1182 = vmatprep.subr.mxu0 0.0
        %1183 = vmatpush1.msra.mxu0 0.0
        %1184 = vmatprep.subr.mxu0 0.0
        %1185 = vmatpush1.msra.mxu0 0.0
        %1186 = vmatprep.subr.mxu0 0.0
        %1187 = vmatpush1.msra.mxu0 0.0
        %1188 = vmatprep.subr.mxu0 0.0
        %1189 = vmatpush1.msra.mxu0 0.0
        %1190 = vmatprep.subr.mxu0 0.0
        %1191 = vmatpush1.msra.mxu0 0.0
        %1192 = vmatprep.subr.mxu0 0.0
        %1193 = vmatpush1.msra.mxu0 0.0
        %1194 = vmatprep.subr.mxu0 0.0
        %1195 = vmatpush1.msra.mxu0 0.0
        %1196 = vmatprep.subr.mxu0 0.0
        %1197 = vmatpush1.msra.mxu0 0.0
        %1198 = vmatprep.subr.mxu0 0.0
        %1199 = vmatpush1.msra.mxu0 0.0
        %1200 = vmatprep.subr.mxu0 0.0
        %1201 = vmatpush1.msra.mxu0 0.0
        %1202 = vmatprep.subr.mxu0 0.0
        %1203 = vmatpush1.msra.mxu0 0.0
        %1204 = vmatprep.subr.mxu0 0.0
        %1205 = vmatpush1.msra.mxu0 0.0
        %1206 = vmatprep.subr.mxu0 0.0
        %1207 = vmatpush1.msra.mxu0 0.0
        %1208 = vmatprep.subr.mxu0 0.0
        %1209 = vmatpush1.msra.mxu0 0.0
        %1210 = vmatprep.subr.mxu0 0.0
        %1211 = vmatpush1.msra.mxu0 0.0
        %1212 = vmatprep.subr.mxu0 0.0
        %1213 = vmatpush1.msra.mxu0 0.0
        %1214 = vmatprep.subr.mxu0 0.0
        %1215 = vmatpush1.msra.mxu0 0.0
        %1216 = vmatprep.subr.mxu0 0.0
        %1217 = vmatpush1.msra.mxu0 0.0
        %1218 = vmatprep.subr.mxu0 0.0
        %1219 = vmatpush1.msra.mxu0 0.0
        %1220 = vmatprep.subr.mxu0 0.0
        %1221 = vmatpush1.msra.mxu0 0.0
        %1222 = vmatprep.subr.mxu0 0.0
        %1223 = vmatpush1.msra.mxu0 0.0
        %1224 = vmatprep.subr.mxu0 0.0
        %1225 = vmatpush1.msra.mxu0 0.0
        %1226 = vmatprep.subr.mxu0 0.0
        %1227 = vmatpush1.msra.mxu0 0.0
        %1228 = vmatprep.subr.mxu0 0.0
        %1229 = vmatpush1.msra.mxu0 0.0
        %1230 = vmatprep.subr.mxu0 0.0
        %1231 = vmatpush1.msra.mxu0 0.0
        %1232 = vmatprep.subr.mxu0 0.0
        %1233 = vmatpush1.msra.mxu0 0.0
        %1234 = vmatprep.subr.mxu0 0.0
        %1235 = vmatpush1.msra.mxu0 0.0
        %1236 = vmatprep.subr.mxu0 0.0
        %1237 = vmatpush1.msra.mxu0 0.0
        %1238 = vmatprep.subr.mxu0 0.0
        %1239 = vmatpush1.msra.mxu0 0.0
        %1240 = vmatprep.subr.mxu0 0.0
        %1241 = vmatpush1.msra.mxu0 0.0
        %1242 = vmatprep.subr.mxu0 0.0
        %1243 = vmatpush1.msra.mxu0 0.0
        %1244 = vmatprep.mubr.f32.mxu0 0.0
        %1245 = vmatmul.mubr.f32.gmra.mrb[0].mxu0 %v1171
        %v1246 = vpop.f32.mrb[0].mxu0
        %v1247 = vadd.f32 0.0, %v1246
        %v1248 = vpop.f32.mrb[0].mxu0
        %1249 = vmatprep.mubr.f32.mxu0 0.0
        %1250 = vmatmul.mubr.f32.gmra.mrb[0].mxu0 %v1174
        %v1251 = vpop.f32.mrb[0].mxu0
        %v1252 = vadd.f32 0.0, %v1251
        %v1253 = vpop.f32.mrb[0].mxu0
        %1254 = vdwg.mxu0
        %v1255 = vld [vmem:[%s11] sm:$0x3]
        %v1257 = vsel %vm1169, %v1247, 0
        %v1260 = vsel %vm1169, %v1252, 0
        %v1263 = vsel %vm1176, %v1255, 0
        %1265 = vmatprep.subr.mxu0 0.0
        %1266 = vmatpush1.msra.mxu0 %v1263
        %1267 = vmatprep.subr.mxu0 0.0
        %1268 = vmatpush1.msra.mxu0 0.0
        %1269 = vmatprep.subr.mxu0 0.0
        %1270 = vmatpush1.msra.mxu0 0.0
        %1271 = vmatprep.subr.mxu0 0.0
        %1272 = vmatpush1.msra.mxu0 0.0
        %1273 = vmatprep.subr.mxu0 0.0
        %1274 = vmatpush1.msra.mxu0 0.0
        %1275 = vmatprep.subr.mxu0 0.0
        %1276 = vmatpush1.msra.mxu0 0.0
        %1277 = vmatprep.subr.mxu0 0.0
        %1278 = vmatpush1.msra.mxu0 0.0
        %1279 = vmatprep.subr.mxu0 0.0
        %1280 = vmatpush1.msra.mxu0 0.0
        %1281 = vmatprep.subr.mxu0 0.0
        %1282 = vmatpush1.msra.mxu0 0.0
        %1283 = vmatprep.subr.mxu0 0.0
        %1284 = vmatpush1.msra.mxu0 0.0
        %1285 = vmatprep.subr.mxu0 0.0
        %1286 = vmatpush1.msra.mxu0 0.0
        %1287 = vmatprep.subr.mxu0 0.0
        %1288 = vmatpush1.msra.mxu0 0.0
        %1289 = vmatprep.subr.mxu0 0.0
        %1290 = vmatpush1.msra.mxu0 0.0
        %1291 = vmatprep.subr.mxu0 0.0
        %1292 = vmatpush1.msra.mxu0 0.0
        %1293 = vmatprep.subr.mxu0 0.0
        %1294 = vmatpush1.msra.mxu0 0.0
        %1295 = vmatprep.subr.mxu0 0.0
        %1296 = vmatpush1.msra.mxu0 0.0
        %1297 = vmatprep.subr.mxu0 0.0
        %1298 = vmatpush1.msra.mxu0 0.0
        %1299 = vmatprep.subr.mxu0 0.0
        %1300 = vmatpush1.msra.mxu0 0.0
        %1301 = vmatprep.subr.mxu0 0.0
        %1302 = vmatpush1.msra.mxu0 0.0
        %1303 = vmatprep.subr.mxu0 0.0
        %1304 = vmatpush1.msra.mxu0 0.0
        %1305 = vmatprep.subr.mxu0 0.0
        %1306 = vmatpush1.msra.mxu0 0.0
        %1307 = vmatprep.subr.mxu0 0.0
        %1308 = vmatpush1.msra.mxu0 0.0
        %1309 = vmatprep.subr.mxu0 0.0
        %1310 = vmatpush1.msra.mxu0 0.0
        %1311 = vmatprep.subr.mxu0 0.0
        %1312 = vmatpush1.msra.mxu0 0.0
        %1313 = vmatprep.subr.mxu0 0.0
        %1314 = vmatpush1.msra.mxu0 0.0
        %1315 = vmatprep.subr.mxu0 0.0
        %1316 = vmatpush1.msra.mxu0 0.0
        %1317 = vmatprep.subr.mxu0 0.0
        %1318 = vmatpush1.msra.mxu0 0.0
        %1319 = vmatprep.subr.mxu0 0.0
        %1320 = vmatpush1.msra.mxu0 0.0
        %1321 = vmatprep.subr.mxu0 0.0
        %1322 = vmatpush1.msra.mxu0 0.0
        %1323 = vmatprep.subr.mxu0 0.0
        %1324 = vmatpush1.msra.mxu0 0.0
        %1325 = vmatprep.subr.mxu0 0.0
        %1326 = vmatpush1.msra.mxu0 0.0
        %1327 = vmatprep.subr.mxu0 0.0
        %1328 = vmatpush1.msra.mxu0 0.0
        %1329 = vmatprep.mubr.f32.mxu0 0.0
        %1330 = vmatmul.mubr.f32.gmra.mrb[0].mxu0 %v1257
        %v1331 = vpop.f32.mrb[0].mxu0
        %v1332 = vadd.f32 0.0, %v1331
        %v1333 = vpop.f32.mrb[0].mxu0
        %1334 = vmatprep.mubr.f32.mxu0 0.0
        %1335 = vmatmul.mubr.f32.gmra.mrb[0].mxu0 %v1260
        %v1336 = vpop.f32.mrb[0].mxu0
        %v1337 = vadd.f32 0.0, %v1336
        %v1338 = vpop.f32.mrb[0].mxu0
        %1339 = vdwg.mxu0
        %v1340 = vadd.f32 %v980, %v1332
        %v1341 = vadd.f32 %v985, %v1337
        %vm1342 = vcmask 130048
        %1343 = vst.msk [vmem:[%s481] sm:$0xff] %vm1342, %v1340
        %1344 = vst.msk [vmem:[%s481 + $0x8] sm:$0xff] %vm1342, %v1341
        %s1345 = sand.u32 %s316, 1
        %s1346 = scalar_lea.sflag [#allocation3], %s1345
        %s1347 = sand.u32 %s316, 1
        %s1348 = smul.addr %s1347, 16
        %s1349 = scalar_lea.vmem [#allocation2], %s1348
        // Predicated region
        $region69: #{tpu_custom_call.1} parent=67 // pred_check
          %p1350 = pneg %p326
        $region70: #{tpu_custom_call.1} parent=67 // pred_check_branch
          %1352 = sbr.rel (%p1350) target = $region72
        $region71: #{tpu_custom_call.1} parent=67 // pred_region
          %s1354 = ssub.s32 256, 256
          %1355 = vsyncadd %s1346, %s1354
          %s1356 = smul.addr %s26, 2
          %s1357 = smul.addr %s1356, 128
          %s1358 = scalar_lea.hbm %s12, %s1357
          %s1359 = sshll.u32 %s1349, 4
          %s1360 = int_to_ptr.vmem [resolvable:$true] %s1359
          %1365 = dma.vmem_to_hbm [thread:$0]  %s1360, 256, %s1358, %s1346, 128, 128, 8
        $region72: #{tpu_custom_call.1} parent=67 // pred_fallthru
          _
      $region68: #{tpu_custom_call.1} parent=5 // pred_fallthru
        _
      %p1366 = scmp.le.s32.totalorder 2, %s21
      // Predicated region
      $region73: #{tpu_custom_call.1} parent=5 // pred_check
        %p1367 = pneg %p1366
      $region74: #{tpu_custom_call.1} parent=5 // pred_check_branch
        %1369 = sbr.rel (%p1367) target = $region76
      $region75: #{tpu_custom_call.1} parent=5 // pred_region
        %s1370 = ssub.s32 %s21, 2
        // Predicated region
        $region77: #{tpu_custom_call.1} parent=75 // pred_check
          %p1371 = pneg %p332
        $region78: #{tpu_custom_call.1} parent=75 // pred_check_branch
          %1373 = sbr.rel (%p1371) target = $region80
        $region79: #{tpu_custom_call.1} parent=75 // pred_region
          %s1374 = sand.u32 %s317, 1
          %s1375 = scalar_lea.sflag [#allocation3], %s1374
          %s1376 = sand.u32 %s317, 1
          %s1377 = smul.addr %s1376, 16
          %s1378 = scalar_lea.vmem [#allocation2], %s1377
          %1379 = dma.done %s1375, 256
        $region80: #{tpu_custom_call.1} parent=75 // pred_fallthru
          _
      $region76: #{tpu_custom_call.1} parent=5 // pred_fallthru
        _
    $region6: #{tpu_custom_call.1} parent=1 // loop_footer
      %s25 = sadd.s32 1, %s21
    $region7: #{tpu_custom_call.1} parent=1 // loop_footer_branch
      %20 = sbr.rel target = $region3
    $region8: #{tpu_custom_call.1} parent=1 // loop_exit
      _
    %1380 = vsyncpa [#allocation3], 1
    %s1381 = scalar_lea.sflag [#allocation3], 1
    %1382 = vsyncpa %s1381, 1

</llo_original>
